<compile_context>
chip_gen: v7x
topology: tpu7x:2x2x1
jax: 0.10.0
libtpu: 0.0.40
codegen_flags: <defaults>
</compile_context>

<pallas_src>
import functools

import jax
import jax.numpy as jnp
from jax import lax
from jax.experimental import pallas as pl
from jax.experimental.pallas import tpu as pltpu

LANE = 128  # pad channel dims to a multiple of the 128-lane axis (lane-dense stores)


def _round_up(x, m):
    return (x + m - 1) // m * m


def _pad_axis(a, axis, target):
    if a.shape[axis] == target:
        return a
    pad = [(0, 0)] * a.ndim
    pad[axis] = (0, target - a.shape[axis])
    return jnp.pad(a, pad)


def _vmem_limit_bytes():
    """Generation-aware VMEM budget: ~3/4 of physical, capped, with a safe floor."""
    try:
        cap = int(getattr(pltpu.get_tpu_info(), "vmem_capacity_bytes", 0)) or (64 << 20)
    except Exception:
        cap = 64 << 20
    return int(max(32 << 20, min(cap * 3 // 4, 100 << 20)))


# -----------------------------------------------------------------------------
# Kernel A: ConvTranspose3d with kernel == stride (non-overlapping taps) + bias.
# One grid step = one batch element, M = D*H*W rows per MXU pass.  Output is
# "tap-major"; taps are interleaved into the upsampled grid by a reshape/transpose
# outside (TODO: move in-kernel).
# -----------------------------------------------------------------------------
def _upconv_kernel(x_ref, w_ref, b_ref, o_ref):
    # x_ref: (D, H, W, Cin) bf16 ; w_ref: (Cin, TAPS*Cp) bf16 ; b_ref: (1, TAPS*Cp) f32
    # o_ref: (D, H, W, TAPS*Cp) bf16
    acc = lax.dot_general(
        x_ref[...], w_ref[...],
        dimension_numbers=(((3,), (0,)), ((), ())),
        preferred_element_type=jnp.float32)
    o_ref[...] = (acc + b_ref[0]).astype(o_ref.dtype)


def upconv3d(x_cl, w_t, b_t, *, kernel, stride):
    """Transpose conv (kernel == stride), channel-last, Cout padded to LANE.

    x_cl: (N, D, H, W, Cin) bf16
    w_t : (Cin, Cout, KD, KH, KW) f32   (PyTorch ConvTranspose3d layout)
    b_t : (Cout,) f32
    returns (N, D*KD, H*KH, W*KW, Cp) bf16
    """
    N, D, H, W, Cin = x_cl.shape
    Cin2, Cout, KD, KH, KW = w_t.shape
    assert Cin2 == Cin
    ks = tuple(int(k) for k in kernel)
    assert (KD, KH, KW) == ks and ks == (int(stride),) * 3, (
        "TODO(synk): only kernel == stride ConvTranspose3d is supported")

    Cp = _round_up(Cout, LANE)
    taps = KD * KH * KW

    w = jnp.transpose(w_t, (0, 2, 3, 4, 1))            # (Cin, KD, KH, KW, Cout)
    w = _pad_axis(w, 4, Cp).reshape(Cin, taps * Cp).astype(jnp.bfloat16)
    b = _pad_axis(b_t.astype(jnp.float32), 0, Cp)
    b = jnp.tile(b, (taps,)).reshape(1, taps * Cp)

    flops = 2 * N * D * H * W * Cin * taps * Cp
    bytes_accessed = (x_cl.size * 2 + w.size * 2 + b.size * 4
                      + N * D * H * W * taps * Cp * 2)

    out = pl.pallas_call(
        _upconv_kernel,
        out_shape=jax.ShapeDtypeStruct((N, D, H, W, taps * Cp), jnp.bfloat16),
        grid_spec=pltpu.PrefetchScalarGridSpec(
            num_scalar_prefetch=0,
            grid=(N,),
            in_specs=[
                pl.BlockSpec((None, D, H, W, Cin), lambda n: (n, 0, 0, 0, 0)),
                pl.BlockSpec((Cin, taps * Cp), lambda n: (0, 0)),
                pl.BlockSpec((1, taps * Cp), lambda n: (0, 0)),
            ],
            out_specs=pl.BlockSpec((None, D, H, W, taps * Cp),
                                   lambda n: (n, 0, 0, 0, 0)),
        ),
        compiler_params=pltpu.CompilerParams(
            dimension_semantics=("parallel",),
            vmem_limit_bytes=_vmem_limit_bytes()),
        cost_estimate=pl.CostEstimate(flops=flops, transcendentals=0,
                                      bytes_accessed=bytes_accessed),
    )(x_cl, w, b)

    # interleave taps into the upsampled grid:
    # out[n,d,h,w,(kd,kh,kw),c] -> up[n, d*KD+kd, h*KH+kh, w*KW+kw, c]
    # TODO(synk): fold this into the kernel (in-VMEM retile) to drop the HBM pass.
    out = out.reshape(N, D, H, W, KD, KH, KW, Cp)
    out = jnp.transpose(out, (0, 1, 4, 2, 5, 3, 6, 7))
    return out.reshape(N, D * KD, H * KH, W * KW, Cp)


# -----------------------------------------------------------------------------
# Kernel B: fused conv1+BN1+ReLU -> conv2+BN2+ReLU (valid 3-D convs), one batch
# element per grid step.  conv1's concat input is weight-folded away, so Cin == Cp.
# The W kernel taps are im2col'ed into the contraction (K = KW*Cp per dot), the
# intermediate activation stays in a bf16 VMEM scratch, and each output row is
# accumulated through a small f32 VMEM scratch.
# -----------------------------------------------------------------------------
def _double_conv_kernel(xu_ref, w1_ref, s1_ref, b1_ref, w2_ref, s2_ref, b2_ref,
                        o_ref, mid_ref, acc1_ref, acc2_ref, *, k1, k2):
    KD1, KH1, KW1, dil1 = k1
    KD2, KH2, KW2, dil2 = k2
    Do1, Ho1, Wo1, Cp = mid_ref.shape
    Do2, Ho2, Wo2, _ = o_ref.shape

    # ---- stage 1: conv1 (bf16 MXU, f32 acc) + folded BN + ReLU -> VMEM scratch
    def stage1(do, carry):
        for kd in range(KD1):
            for kh in range(KH1):
                # im2col along W: one MXU pass with K = KW1*Cp (>=256 on v6e/v7x).
                patch = jnp.concatenate(
                    [xu_ref[do + kd * dil1,
                            pl.ds(kh * dil1, Ho1),
                            pl.ds(kw * dil1, Wo1), :] for kw in range(KW1)],
                    axis=-1)
                part = lax.dot_general(
                    patch, w1_ref[kd, kh],
                    dimension_numbers=(((2,), (0,)), ((), ())),
                    preferred_element_type=jnp.float32)
                if kd == 0 and kh == 0:
                    acc1_ref[...] = part
                else:
                    acc1_ref[...] += part
        z = jnp.maximum(acc1_ref[...] * s1_ref[0] + b1_ref[0], 0.0)
        mid_ref[do] = z.astype(mid_ref.dtype)
        return carry

    lax.fori_loop(0, Do1, stage1, 0, unroll=True)

    # ---- stage 2: conv2 on the VMEM-resident intermediate + folded BN + ReLU
    def stage2(do, carry):
        for kd in range(KD2):
            for kh in range(KH2):
                patch = jnp.concatenate(
                    [mid_ref[do + kd * dil2,
                             pl.ds(kh * dil2, Ho2),
                             pl.ds(kw * dil2, Wo2), :] for kw in range(KW2)],
                    axis=-1)
                part = lax.dot_general(
                    patch, w2_ref[kd, kh],
                    dimension_numbers=(((2,), (0,)), ((), ())),
                    preferred_element_type=jnp.float32)
                if kd == 0 and kh == 0:
                    acc2_ref[...] = part
                else:
                    acc2_ref[...] += part
        z = jnp.maximum(acc2_ref[...] * s2_ref[0] + b2_ref[0], 0.0)
        o_ref[do] = z.astype(o_ref.dtype)
        return carry

    lax.fori_loop(0, Do2, stage2, 0, unroll=True)


def double_conv_bn_relu(x_up, w1, s1, b1, w2, s2, b2, *, k1, k2, dil1, dil2):
    """x_up: (N, Du, Hu, Wu, Cp) bf16; w: (KD, KH, KW*Cp, Cp) bf16; s/b: (1, Cp) f32."""
    N, Du, Hu, Wu, Cp = x_up.shape
    KD1, KH1, KW1 = k1
    KD2, KH2, KW2 = k2
    Do1 = Du - dil1 * (KD1 - 1)
    Ho1 = Hu - dil1 * (KH1 - 1)
    Wo1 = Wu - dil1 * (KW1 - 1)
    Do2 = Do1 - dil2 * (KD2 - 1)
    Ho2 = Ho1 - dil2 * (KH2 - 1)
    Wo2 = Wo1 - dil2 * (KW2 - 1)
    assert min(Do1, Ho1, Wo1, Do2, Ho2, Wo2) > 0
    assert w1.shape == (KD1, KH1, KW1 * Cp, Cp)
    assert w2.shape == (KD2, KH2, KW2 * Cp, Cp)

    kernel = functools.partial(_double_conv_kernel,
                               k1=(KD1, KH1, KW1, dil1),
                               k2=(KD2, KH2, KW2, dil2))

    flops = 2 * N * (Do1 * Ho1 * Wo1 * KD1 * KH1 * KW1 * Cp * Cp
                     + Do2 * Ho2 * Wo2 * KD2 * KH2 * KW2 * Cp * Cp)
    bytes_accessed = (x_up.size * 2 + w1.size * 2 + w2.size * 2
                      + (s1.size + b1.size + s2.size + b2.size) * 4
                      + N * Do2 * Ho2 * Wo2 * Cp * 2)

    # TODO(synk): single-buffer w1/w2 (pipeline_mode=pl.Buffered(1)) for large Cp on
    #             v7x; add a halo'd depth-tile grid axis for volumes that exceed VMEM.
    return pl.pallas_call(
        kernel,
        out_shape=jax.ShapeDtypeStruct((N, Do2, Ho2, Wo2, Cp), jnp.bfloat16),
        grid_spec=pltpu.PrefetchScalarGridSpec(
            num_scalar_prefetch=0,
            grid=(N,),
            in_specs=[
                pl.BlockSpec((None, Du, Hu, Wu, Cp), lambda n: (n, 0, 0, 0, 0)),
                pl.BlockSpec((KD1, KH1, KW1 * Cp, Cp), lambda n: (0, 0, 0, 0)),
                pl.BlockSpec((1, Cp), lambda n: (0, 0)),
                pl.BlockSpec((1, Cp), lambda n: (0, 0)),
                pl.BlockSpec((KD2, KH2, KW2 * Cp, Cp), lambda n: (0, 0, 0, 0)),
                pl.BlockSpec((1, Cp), lambda n: (0, 0)),
                pl.BlockSpec((1, Cp), lambda n: (0, 0)),
            ],
            out_specs=pl.BlockSpec((None, Do2, Ho2, Wo2, Cp),
                                   lambda n: (n, 0, 0, 0, 0)),
            scratch_shapes=[
                pltpu.VMEM((Do1, Ho1, Wo1, Cp), jnp.bfloat16),   # conv1 activations
                pltpu.VMEM((Ho1, Wo1, Cp), jnp.float32),         # stage-1 row accumulator
                pltpu.VMEM((Ho2, Wo2, Cp), jnp.float32),         # stage-2 row accumulator
            ],
        ),
        compiler_params=pltpu.CompilerParams(
            dimension_semantics=("parallel",),
            vmem_limit_bytes=_vmem_limit_bytes()),
        cost_estimate=pl.CostEstimate(flops=flops, transcendentals=0,
                                      bytes_accessed=bytes_accessed),
    )(x_up, w1, s1, b1, w2, s2, b2)


# -----------------------------------------------------------------------------
# Up block wrapper (PyTorch NCDHW at the boundary, channel-last inside)
# -----------------------------------------------------------------------------
def _fold_bn(conv_bias, gamma, beta, mean, var, eps=1e-5):
    scale = gamma / jnp.sqrt(var + eps)
    bias = (conv_bias - mean) * scale + beta
    return scale, bias


def up_forward(x, y, params):
    """x: (N, in_channels, D, H, W) f32, y: (N, out_channels, Dy, Hy, Wy) f32."""
    assert params["groups"]["conv1"] == 1 and params["groups"]["conv2"] == 1, (
        "TODO(synk): grouped conv not implemented")

    up_w, up_b = params["up_w"], params["up_b"]
    Cout = up_w.shape[1]
    Cp = _round_up(Cout, LANE)

    # NCDHW -> NDHWC (channels on the 128-lane axis), bf16 activations.
    x_cl = jnp.transpose(x, (0, 2, 3, 4, 1)).astype(jnp.bfloat16)

    # ---- up_conv ----
    x_up = upconv3d(x_cl, up_w, up_b, kernel=params["upsample_kernel"],
                    stride=params["upsample_stride"])      # (N, Du, Hu, Wu, Cp)

    # ---- y = crop(x, y); x = cat((x, y), dim=1) ----
    # crop() slices the *upsampled x* to y's spatial shape; torch.cat then requires
    # equal spatial dims, which forces crop to be the identity => crop(x_up, y) == x_up.
    # Therefore conv1(cat(x_up, x_up)) is computed exactly with the folded weight
    # w1a + w1b, eliminating the concatenate and the doubled conv1 input.
    assert Cout == y.shape[1], "crop(): inputs do not have same feature dims"
    Dy, Hy, Wy = y.shape[2], y.shape[3], y.shape[4]
    _, Du, Hu, Wu, _ = x_up.shape
    assert Dy >= Du and Hy >= Hu and Wy >= Wu, (
        "torch.cat would fail: crop(x, y) has smaller spatial dims than x")

    k1d, k1h, k1w = params["conv1_w"].shape[2:]
    k2d, k2h, k2w = params["conv2_w"].shape[2:]

    # conv1 weight: (Cout, 2*Cout, K,K,K) -> fold halves -> pad -> fold KW into K.
    w1 = jnp.transpose(params["conv1_w"], (2, 3, 4, 1, 0))   # (K,K,K, 2*Cout, Cout)
    assert w1.shape[3] == 2 * Cout, "Up requires conv1 in_channels == 2*out_channels"
    w1_eff = w1[..., :Cout, :] + w1[..., Cout:, :]           # exact: y_c == x_up
    w1p = _pad_axis(_pad_axis(w1_eff, 3, Cp), 4, Cp)         # (K,K,K, Cp, Cp)
    w1p = w1p.reshape(k1d, k1h, k1w * Cp, Cp).astype(jnp.bfloat16)

    w2 = jnp.transpose(params["conv2_w"], (2, 3, 4, 1, 0))   # (K,K,K, Cout, Cout)
    w2p = _pad_axis(_pad_axis(w2, 3, Cp), 4, Cp)
    w2p = w2p.reshape(k2d, k2h, k2w * Cp, Cp).astype(jnp.bfloat16)

    s1, b1 = _fold_bn(params["conv1_b"], params["bn1_gamma"], params["bn1_beta"],
                      params["bn1_mean"], params["bn1_var"])
    s2, b2 = _fold_bn(params["conv2_b"], params["bn2_gamma"], params["bn2_beta"],
                      params["bn2_mean"], params["bn2_var"])
    s1p = _pad_axis(s1, 0, Cp).reshape(1, Cp).astype(jnp.float32)
    b1p = _pad_axis(b1, 0, Cp).reshape(1, Cp).astype(jnp.float32)
    s2p = _pad_axis(s2, 0, Cp).reshape(1, Cp).astype(jnp.float32)
    b2p = _pad_axis(b2, 0, Cp).reshape(1, Cp).astype(jnp.float32)

    out_p = double_conv_bn_relu(x_up, w1p, s1p, b1p, w2p, s2p, b2p,
                                k1=(k1d, k1h, k1w), k2=(k2d, k2h, k2w),
                                dil1=params["dilation"]["conv1"],
                                dil2=params["dilation"]["conv2"])

    out = out_p[..., :Cout].astype(jnp.float32)              # drop lane padding
    return jnp.transpose(out, (0, 4, 1, 2, 3))               # NDHWC -> NCDHW


# -----------------------------------------------------------------------------
# Pure-JAX reference (f32) used only for the self-check
# -----------------------------------------------------------------------------
def up_forward_reference(x, y, params, eps=1e-5):
    up_w, up_b = params["up_w"], params["up_b"]
    _, Cout, KD, KH, KW = up_w.shape
    N, _, D, H, W = x.shape
    x_cl = jnp.transpose(x, (0, 2, 3, 4, 1)).astype(jnp.float32)
    up = jnp.einsum("nDHWi,ioxyz->nDxHyWzo", x_cl, up_w)
    up = up.reshape(N, D * KD, H * KH, W * KW, Cout) + up_b

    Dy, Hy, Wy = y.shape[2], y.shape[3], y.shape[4]
    y_c = up[:, :Dy, :Hy, :Wy, :]
    z = jnp.concatenate([up, y_c], axis=-1)

    def conv_bn_relu(z, w, cb, g, b, m, v, dil):
        w_dhwio = jnp.transpose(w, (2, 3, 4, 1, 0))
        out = lax.conv_general_dilated(
            z, w_dhwio, window_strides=(1, 1, 1), padding="VALID",
            rhs_dilation=(dil, dil, dil),
            dimension_numbers=("NDHWC", "DHWIO", "NDHWC"))
        scale = g / jnp.sqrt(v + eps)
        bias = (cb - m) * scale + b
        return jnp.maximum(out * scale + bias, 0.0)

    z = conv_bn_relu(z, params["conv1_w"], params["conv1_b"], params["bn1_gamma"],
                     params["bn1_beta"], params["bn1_mean"], params["bn1_var"],
                     params["dilation"]["conv1"])
    z = conv_bn_relu(z, params["conv2_w"], params["conv2_b"], params["bn2_gamma"],
                     params["bn2_beta"], params["bn2_mean"], params["bn2_var"],
                     params["dilation"]["conv2"])
    return jnp.transpose(z, (0, 4, 1, 2, 3))


def init_params(key, in_channels, out_channels, *, kernel, upsample_kernel,
                upsample_stride, dilation, groups):
    ks = jax.random.split(key, 12)
    C = out_channels
    k1, k2 = kernel["conv1"], kernel["conv2"]
    return {
        # ConvTranspose3d weight layout: (in_channels, out_channels, kD, kH, kW)
        "up_w": 0.1 * jax.random.normal(ks[0], (in_channels, C) + tuple(upsample_kernel), jnp.float32),
        "up_b": 0.1 * jax.random.normal(ks[1], (C,), jnp.float32),
        # Conv3d weight layout: (out_channels, in_channels, kD, kH, kW)
        "conv1_w": 0.1 * jax.random.normal(ks[2], (C, in_channels, k1, k1, k1), jnp.float32),
        "conv1_b": 0.1 * jax.random.normal(ks[3], (C,), jnp.float32),
        "conv2_w": 0.1 * jax.random.normal(ks[4], (C, C, k2, k2, k2), jnp.float32),
        "conv2_b": 0.1 * jax.random.normal(ks[5], (C,), jnp.float32),
        "bn1_gamma": 1.0 + 0.1 * jax.random.normal(ks[6], (C,), jnp.float32),
        "bn1_beta": 0.1 * jax.random.normal(ks[7], (C,), jnp.float32),
        "bn1_mean": 0.05 * jax.random.normal(ks[8], (C,), jnp.float32),
        "bn1_var": jnp.abs(1.0 + 0.1 * jax.random.normal(ks[9], (C,), jnp.float32)),
        "bn2_gamma": 1.0 + 0.1 * jax.random.normal(ks[10], (C,), jnp.float32),
        "bn2_beta": 0.1 * jax.random.normal(ks[11], (C,), jnp.float32),
        "bn2_mean": jnp.zeros((C,), jnp.float32),
        "bn2_var": jnp.ones((C,), jnp.float32),
        "upsample_kernel": tuple(upsample_kernel),
        "upsample_stride": upsample_stride,
        "dilation": dict(dilation),
        "groups": dict(groups),
    }


if __name__ == "__main__":
    key = jax.random.PRNGKey(0)
    kx, ky, kp = jax.random.split(key, 3)

    N = 2
    out_channels = 4
    in_channels = 2 * out_channels        # forward requires cat channels == conv1 in_channels
    D, H, W = 4, 8, 8                     # pre-upsample spatial size

    x = jax.random.normal(kx, (N, in_channels, D, H, W), jnp.float32)
    # skip connection: forward only consumes its *shape* (crop(x, y)); its spatial
    # dims must be >= the upsampled x for torch.cat to succeed.
    y = jax.random.normal(ky, (N, out_channels, 10, 18, 18), jnp.float32)

    params = init_params(kp, in_channels, out_channels,
                         kernel={"conv1": 3, "conv2": 3},
                         upsample_kernel=(2, 2, 2), upsample_stride=2,
                         dilation={"conv1": 1, "conv2": 1},
                         groups={"conv1": 1, "conv2": 1})

    out = jax.block_until_ready(up_forward(x, y, params))

    # upsample 4,8,8 -> 8,16,16 ; two valid 3x3x3 convs: -> 6,14,14 -> 4,12,12
    assert out.shape == (N, out_channels, 4, 12, 12), out.shape
    assert bool(jnp.all(out >= 0.0))      # ReLU output

    ref = jax.block_until_ready(up_forward_reference(x, y, params))
    err = float(jnp.max(jnp.abs(out - ref)))
    scale = float(jnp.max(jnp.abs(ref))) + 1e-6
    assert err <= 0.05 * scale, (err, scale)

    print("KERNEL_OK")
</pallas_src>

<mosaic_0001>
module attributes {stable_mosaic.version = 11 : i64} {
  func.func @_upconv_kernel(%arg0: i32, %arg1: memref<1x4x8x8x8xbf16, #tpu.memory_space<vmem>>, %arg2: memref<8x1024xbf16, #tpu.memory_space<vmem>>, %arg3: memref<1x1024xf32, #tpu.memory_space<vmem>>, %arg4: memref<1x4x8x8x1024xbf16, #tpu.memory_space<vmem>>) attributes {dimension_semantics = [#tpu.dimension_semantics<parallel>], iteration_bounds = array<i64: 2>, scalar_prefetch = 0 : i64, scratch_operands = 0 : i64, tpu.core_type = #tpu.core_type<tc>, window_params = [{transform_indices = @transform_0, window_bounds = array<i64: 1, 4, 8, 8, 8>}, {pipeline_mode = #tpu.pipeline_mode<synchronous>, transform_indices = @transform_1, window_bounds = array<i64: 8, 1024>}, {pipeline_mode = #tpu.pipeline_mode<synchronous>, transform_indices = @transform_2, window_bounds = array<i64: 1, 1024>}, {transform_indices = @transform_3, window_bounds = array<i64: 1, 4, 8, 8, 1024>}]} {
    %c0 = arith.constant 0 : index
    %c0_0 = arith.constant 0 : index
    %c0_1 = arith.constant 0 : index
    %c0_2 = arith.constant 0 : index
    %c0_3 = arith.constant 0 : index
    %0 = vector.load %arg1[%c0, %c0_0, %c0_1, %c0_2, %c0_3] : memref<1x4x8x8x8xbf16, #tpu.memory_space<vmem>>, vector<1x4x8x8x8xbf16>
    %1 = vector.shape_cast %0 : vector<1x4x8x8x8xbf16> to vector<4x8x8x8xbf16>
    %c0_4 = arith.constant 0 : index
    %c0_5 = arith.constant 0 : index
    %2 = vector.load %arg2[%c0_4, %c0_5] : memref<8x1024xbf16, #tpu.memory_space<vmem>>, vector<8x1024xbf16>
    %cst = arith.constant dense<0.000000e+00> : vector<4x8x8x1024xf32>
    %3 = tpu.matmul %1, %2, %cst {dimension_numbers = #tpu.dot_dimension_numbers<[3], [0], [0, 1, 2], [1], [0, 0, 0, 1, 0, 2, 1, 1], [], []>} : vector<4x8x8x8xbf16>, vector<8x1024xbf16>, vector<4x8x8x1024xf32> -> vector<4x8x8x1024xf32>
    %c0_6 = arith.constant 0 : index
    %c0_7 = arith.constant 0 : index
    %4 = vector.load %arg3[%c0_6, %c0_7] : memref<1x1024xf32, #tpu.memory_space<vmem>>, vector<1x1024xf32>
    %5 = vector.shape_cast %4 : vector<1x1024xf32> to vector<1024xf32>
    %6 = vector.shape_cast %5 : vector<1024xf32> to vector<1x1x1x1024xf32>
    %7 = vector.broadcast %6 : vector<1x1x1x1024xf32> to vector<4x8x8x1024xf32>
    %8 = arith.addf %3, %7 : vector<4x8x8x1024xf32>
    %9 = arith.truncf %8 : vector<4x8x8x1024xf32> to vector<4x8x8x1024xbf16>
    %c0_8 = arith.constant 0 : index
    %c0_9 = arith.constant 0 : index
    %c0_10 = arith.constant 0 : index
    %c0_11 = arith.constant 0 : index
    %c0_12 = arith.constant 0 : index
    %10 = vector.load %arg4[%c0_8, %c0_9, %c0_10, %c0_11, %c0_12] : memref<1x4x8x8x1024xbf16, #tpu.memory_space<vmem>>, vector<1x4x8x8x1024xbf16>
    %11 = vector.shape_cast %10 : vector<1x4x8x8x1024xbf16> to vector<4x8x8x1024xbf16>
    %12 = vector.shape_cast %9 : vector<4x8x8x1024xbf16> to vector<1x4x8x8x1024xbf16>
    tpu.vector_store %arg4[%c0_8, %c0_9, %c0_10, %c0_11, %c0_12], %12 {strides = array<i32>} : memref<1x4x8x8x1024xbf16, #tpu.memory_space<vmem>>, vector<1x4x8x8x1024xbf16>,
    return
  }
  func.func @transform_0(%arg0: i32) -> (i32, i32, i32, i32, i32) {
    %c0_i32 = arith.constant 0 : i32
    %c0_i32_0 = arith.constant 0 : i32
    %c0_i32_1 = arith.constant 0 : i32
    %c0_i32_2 = arith.constant 0 : i32
    %c0_i32_3 = arith.constant 0 : i32
    return %arg0, %c0_i32, %c0_i32_0, %c0_i32_1, %c0_i32_2 : i32, i32, i32, i32, i32
  }
  func.func @transform_1(%arg0: i32) -> (i32, i32) {
    %c0_i32 = arith.constant 0 : i32
    %c0_i32_0 = arith.constant 0 : i32
    %c0_i32_1 = arith.constant 0 : i32
    return %c0_i32, %c0_i32_0 : i32, i32
  }
  func.func @transform_2(%arg0: i32) -> (i32, i32) {
    %c0_i32 = arith.constant 0 : i32
    %c0_i32_0 = arith.constant 0 : i32
    %c0_i32_1 = arith.constant 0 : i32
    return %c0_i32, %c0_i32_0 : i32, i32
  }
  func.func @transform_3(%arg0: i32) -> (i32, i32, i32, i32, i32) {
    %c0_i32 = arith.constant 0 : i32
    %c0_i32_0 = arith.constant 0 : i32
    %c0_i32_1 = arith.constant 0 : i32
    %c0_i32_2 = arith.constant 0 : i32
    %c0_i32_3 = arith.constant 0 : i32
    return %arg0, %c0_i32, %c0_i32_0, %c0_i32_1, %c0_i32_2 : i32, i32, i32, i32, i32
  }
}

</mosaic_0001>

<llo_original>
// kernel: tpu_custom_call.1
$region0: #{tpu_custom_call.1}
  #allocation0 [shape = 'u32[]', space=smem, size = 0x4, offset = 0x4, fixed_abs, tag = 'smem constant byte address 0x4 - core index']
  #allocation1 [shape = 'u32[144,128]{1,0:T(1,128)}', space=vmem, size = 0x12000, scoped, tag = 'internal scratch']
  %s0 = inlined_call_operand.hbm [shape: bf16[2,4,8,8,8], index: 0, kind: input, shape index: {}]
  %s1 = inlined_call_operand.hbm [shape: bf16[8,1024], index: 1, kind: input, shape index: {}]
  %s2 = inlined_call_operand.hbm [shape: f32[1,1024], index: 2, kind: input, shape index: {}]
  %s3 = inlined_call_operand.hbm [shape: bf16[2,4,8,8,1024], index: 3, kind: output, shape index: {}]
  %s4 = sld [smem:[#allocation0]]
  $region57: #{tpu_custom_call.1} parent=0
    _
  %s6 = ssub.s32 1, %s4
  %s7 = scalar_select 0, %s6, %s4
  $region1: #{tpu_custom_call.1} parent=0
    #allocation2 [shape = 'u8[131072]{0}', space=vmem, size = 0x20000, scoped, tag = 'input window, operand 0']
    #allocation3 [shape = 's32[2]{0}', space=sflag, size = 0x8, scoped, tag = 'scoped memory for tpu_custom_call.1']
    #allocation4 [shape = 's32[2]{0}', space=sflag, size = 0x8, scoped, tag = 'scoped memory for tpu_custom_call.1']
    #allocation5 [shape = 'u8[16384]{0}', space=vmem, size = 0x4000, scoped, tag = 'input window, operand 1, single buffered']
    #allocation6 [shape = 's32[1]{0}', space=sflag, size = 0x4, scoped, tag = 'scoped memory for tpu_custom_call.1']
    #allocation7 [shape = 'u8[4096]{0}', space=vmem, size = 0x1000, scoped, tag = 'input window, operand 2, single buffered']
    #allocation8 [shape = 'u8[1048576]{0}', space=vmem, size = 0x100000, scoped, tag = 'output window, operand 0']
    %8 = vsyncpa [#allocation3], 0
    %s9 = scalar_lea.sflag [#allocation3], 1
    %10 = vsyncpa %s9, 0
    %11 = vsyncpa [#allocation6], 0
    %12 = vsyncpa [#allocation4], 0
    %s13 = scalar_lea.sflag [#allocation4], 1
    %14 = vsyncpa %s13, 0
    loop: start=0, step=1, limit=4
    $region2: #{tpu_custom_call.1} parent=1 // loop_pre_header
      _
    $region3: #{tpu_custom_call.1} parent=1 // loop_header
      %s16 = sphi 0, %s20
      %p17 = scmp.ge.s32.totalorder %s16, 4
      %s26 = sphi 0, %s28
      %s29 = sphi 0, %s26
      %s30 = sphi 0, %s29
      %s46 = sphi 0, %s30
      %s50 = sphi 0, %s50
      %s52 = sphi 0, %s50
      %s53 = sphi 0, %s52
      %s67 = sphi 0, %s53
      %s71 = sphi 0, %s71
      %s73 = sphi 0, %s71
      %s74 = sphi 0, %s73
      %s88 = sphi 0, %s74
      %s94 = sphi 0, %s96
      %s97 = sphi 0, %s94
      %s98 = sphi 0, %s97
      %s114 = sphi 0, %s98
    $region4: #{tpu_custom_call.1} parent=1 // loop_header_branch
      %19 = sbr.rel (%p17) target = $region8
    $region5: #{tpu_custom_call.1} parent=1 // loop_body
      %s21 = ssub.s32 %s16, 1
      %s22 = ssub.s32 %s16, 2
      %s23 = sadd.s32 %s16, 1
      %s24 = ssub.s32 %s16, %s23
      %p25 = scmp.eq.s32.totalorder %s24, 0
      %s27 = sadd.s32 %s26, 1
      %s28 = scalar_select %p25, %s26, %s27
      %p31 = pneg %p25
      %p32 = scmp.eq.s32.totalorder %s16, 1
      %p33 = por %p31, %p32
      %p34 = scmp.ne.s32.totalorder %s26, %s29
      %p35 = scmp.eq.s32.totalorder %s16, 0
      %p36 = por %p34, %p35
      %p37 = scmp.ne.s32.totalorder %s26, %s29
      %p38 = scmp.eq.s32.totalorder %s21, 1
      %p39 = por %p37, %p38
      %p40 = scmp.ne.s32.totalorder %s29, %s30
      %p41 = scmp.eq.s32.totalorder %s21, 0
      %p42 = por %p40, %p41
      %p43 = scmp.ne.s32.totalorder %s29, %s30
      %p44 = scmp.eq.s32.totalorder %s22, 1
      %p45 = por %p43, %p44
      %p47 = scmp.ne.s32.totalorder %s30, %s46
      %p48 = scmp.eq.s32.totalorder %s22, 0
      %p49 = por %p47, %p48
      %s51 = sadd.s32 %s50, 1
      %p54 = scmp.eq.s32.totalorder %s16, 1
      %p55 = scmp.ne.s32.totalorder %s50, %s52
      %p56 = scmp.eq.s32.totalorder %s16, 0
      %p57 = por %p55, %p56
      %p58 = scmp.ne.s32.totalorder %s50, %s52
      %p59 = scmp.eq.s32.totalorder %s21, 1
      %p60 = por %p58, %p59
      %p61 = scmp.ne.s32.totalorder %s52, %s53
      %p62 = scmp.eq.s32.totalorder %s21, 0
      %p63 = por %p61, %p62
      %p64 = scmp.ne.s32.totalorder %s52, %s53
      %p65 = scmp.eq.s32.totalorder %s22, 1
      %p66 = por %p64, %p65
      %p68 = scmp.ne.s32.totalorder %s53, %s67
      %p69 = scmp.eq.s32.totalorder %s22, 0
      %p70 = por %p68, %p69
      %s72 = sadd.s32 %s71, 1
      %p75 = scmp.eq.s32.totalorder %s16, 1
      %p76 = scmp.ne.s32.totalorder %s71, %s73
      %p77 = scmp.eq.s32.totalorder %s16, 0
      %p78 = por %p76, %p77
      %p79 = scmp.ne.s32.totalorder %s71, %s73
      %p80 = scmp.eq.s32.totalorder %s21, 1
      %p81 = por %p79, %p80
      %p82 = scmp.ne.s32.totalorder %s73, %s74
      %p83 = scmp.eq.s32.totalorder %s21, 0
      %p84 = por %p82, %p83
      %p85 = scmp.ne.s32.totalorder %s73, %s74
      %p86 = scmp.eq.s32.totalorder %s22, 1
      %p87 = por %p85, %p86
      %p89 = scmp.ne.s32.totalorder %s74, %s88
      %p90 = scmp.eq.s32.totalorder %s22, 0
      %p91 = por %p89, %p90
      %s92 = ssub.s32 %s16, %s23
      %p93 = scmp.eq.s32.totalorder %s92, 0
      %s95 = sadd.s32 %s94, 1
      %s96 = scalar_select %p93, %s94, %s95
      %p99 = pneg %p93
      %p100 = scmp.eq.s32.totalorder %s16, 1
      %p101 = por %p99, %p100
      %p102 = scmp.ne.s32.totalorder %s94, %s97
      %p103 = scmp.eq.s32.totalorder %s16, 0
      %p104 = por %p102, %p103
      %p105 = scmp.ne.s32.totalorder %s94, %s97
      %p106 = scmp.eq.s32.totalorder %s21, 1
      %p107 = por %p105, %p106
      %p108 = scmp.ne.s32.totalorder %s97, %s98
      %p109 = scmp.eq.s32.totalorder %s21, 0
      %p110 = por %p108, %p109
      %p111 = scmp.ne.s32.totalorder %s97, %s98
      %p112 = scmp.eq.s32.totalorder %s22, 1
      %p113 = por %p111, %p112
      %p115 = scmp.ne.s32.totalorder %s98, %s114
      %p116 = scmp.eq.s32.totalorder %s22, 0
      %p117 = por %p115, %p116
      %p118 = scmp.le.s32.totalorder 1, %s16
      %p119 = scmp.lt.s32.totalorder %s16, 3
      %p120 = pnand %p118, %p119
      %p121 = pneg %p120
      // Predicated region
      $region9: #{tpu_custom_call.1} parent=5 // pred_check
        _
      $region10: #{tpu_custom_call.1} parent=5 // pred_check_branch
        %123 = sbr.rel (%p120) target = $region12
      $region11: #{tpu_custom_call.1} parent=5 // pred_region
        %s124 = ssub.s32 %s16, 1
        // Predicated region
        $region13: #{tpu_custom_call.1} parent=11 // pred_check
          %p125 = pneg %p63
        $region14: #{tpu_custom_call.1} parent=11 // pred_check_branch
          %127 = sbr.rel (%p125) target = $region16
        $region15: #{tpu_custom_call.1} parent=11 // pred_region
          %s129 = ssub.s32 512, 512
          %130 = vsyncadd [#allocation6], %s129
          %s132 = sshll.u32 [#allocation5], 4
          %s133 = int_to_ptr.vmem [resolvable:$true] %s132
          %135 = dma.hbm_to_vmem [thread:$0]  %s1, 512, %s133, [#allocation6]
        $region16: #{tpu_custom_call.1} parent=11 // pred_fallthru
          _
        // Predicated region
        $region17: #{tpu_custom_call.1} parent=11 // pred_check
          %p136 = pneg %p84
        $region18: #{tpu_custom_call.1} parent=11 // pred_check_branch
          %138 = sbr.rel (%p136) target = $region20
        $region19: #{tpu_custom_call.1} parent=11 // pred_region
          %s140 = ssub.s32 128, 128
          %141 = vsyncadd [#allocation6], %s140
          %s143 = sshll.u32 [#allocation7], 4
          %s144 = int_to_ptr.vmem [resolvable:$true] %s143
          %146 = dma.hbm_to_vmem [thread:$0]  %s2, 128, %s144, [#allocation6]
        $region20: #{tpu_custom_call.1} parent=11 // pred_fallthru
          _
      $region12: #{tpu_custom_call.1} parent=5 // pred_fallthru
        _
      %p147 = scmp.lt.s32.totalorder %s16, 2
      // Predicated region
      $region21: #{tpu_custom_call.1} parent=5 // pred_check
        %p148 = pneg %p147
      $region22: #{tpu_custom_call.1} parent=5 // pred_check_branch
        %150 = sbr.rel (%p148) target = $region24
      $region23: #{tpu_custom_call.1} parent=5 // pred_region
        // Predicated region
        $region25: #{tpu_custom_call.1} parent=23 // pred_check
          %p151 = pneg %p36
        $region26: #{tpu_custom_call.1} parent=23 // pred_check_branch
          %153 = sbr.rel (%p151) target = $region28
        $region27: #{tpu_custom_call.1} parent=23 // pred_region
          %s154 = sand.u32 %s26, 1
          %s155 = scalar_lea.sflag [#allocation3], %s154
          %s156 = sand.u32 %s26, 1
          %s157 = smul.addr %s156, 128
          %s158 = scalar_lea.vmem [#allocation2], %s157
          %s160 = ssub.s32 2048, 2048
          %161 = vsyncadd %s155, %s160
          %s162 = smul.addr %s16, 32
          %s163 = smul.addr %s162, 64
          %s164 = scalar_lea.hbm %s0, %s163
          %s165 = sshll.u32 %s158, 4
          %s166 = int_to_ptr.vmem [resolvable:$true] %s165
          %171 = dma.hbm_to_vmem [thread:$0]  %s164, 2048, %s166, %s155, 64, 64, 4
        $region28: #{tpu_custom_call.1} parent=23 // pred_fallthru
          _
      $region24: #{tpu_custom_call.1} parent=5 // pred_fallthru
        _
      %p172 = scmp.le.s32.totalorder 1, %s16
      %p173 = scmp.lt.s32.totalorder %s16, 3
      %p174 = pnand %p172, %p173
      %p175 = pneg %p174
      // Predicated region
      $region29: #{tpu_custom_call.1} parent=5 // pred_check
        _
      $region30: #{tpu_custom_call.1} parent=5 // pred_check_branch
        %177 = sbr.rel (%p174) target = $region32
      $region31: #{tpu_custom_call.1} parent=5 // pred_region
        %s178 = ssub.s32 %s16, 1
        %s179 = sand.u32 %s29, 1
        %s180 = scalar_lea.sflag [#allocation3], %s179
        %s181 = sand.u32 %s29, 1
        %s182 = smul.addr %s181, 128
        %s183 = scalar_lea.vmem [#allocation2], %s182
        // Predicated region
        $region33: #{tpu_custom_call.1} parent=31 // pred_check
          %p184 = pneg %p42
        $region34: #{tpu_custom_call.1} parent=31 // pred_check_branch
          %186 = sbr.rel (%p184) target = $region36
        $region35: #{tpu_custom_call.1} parent=31 // pred_region
          %187 = dma.done %s180, 2048
        $region36: #{tpu_custom_call.1} parent=31 // pred_fallthru
          _
        // Predicated region
        $region37: #{tpu_custom_call.1} parent=31 // pred_check
          %p188 = pneg %p63
        $region38: #{tpu_custom_call.1} parent=31 // pred_check_branch
          %190 = sbr.rel (%p188) target = $region40
        $region39: #{tpu_custom_call.1} parent=31 // pred_region
          %191 = dma.done [#allocation6], 512
        $region40: #{tpu_custom_call.1} parent=31 // pred_fallthru
          _
        // Predicated region
        $region41: #{tpu_custom_call.1} parent=31 // pred_check
          %p192 = pneg %p84
        $region42: #{tpu_custom_call.1} parent=31 // pred_check_branch
          %194 = sbr.rel (%p192) target = $region44
        $region43: #{tpu_custom_call.1} parent=31 // pred_region
          %195 = dma.done [#allocation6], 128
        $region44: #{tpu_custom_call.1} parent=31 // pred_fallthru
          _
        %s196 = sand.u32 %s29, 1
        %s197 = scalar_lea.sflag [#allocation3], %s196
        %s198 = sand.u32 %s29, 1
        %s199 = smul.addr %s198, 128
        %s200 = scalar_lea.vmem [#allocation2], %s199
        %p201 = pneg %p42
        %p202 = pneg %p39
        %p203 = pneg %p63
        %p204 = pneg %p60
        %p205 = pneg %p84
        %p206 = pneg %p81
        %p207 = pneg %p110
        %p208 = pneg %p107
        %s209 = sand.u32 %s97, 1
        %s210 = scalar_lea.sflag [#allocation4], %s209
        %s211 = sand.u32 %s97, 1
        %s212 = smul.addr %s211, 1024
        %s213 = scalar_lea.vmem [#allocation8], %s212
        %v215 = vld [vmem:[%s183] sm:$0xf]
        %v216 = vld [vmem:[%s183 + $0x4] sm:$0xf]
        %v217 = vld [vmem:[%s183 + $0x8] sm:$0xf]
        %v218 = vld [vmem:[%s183 + $0xc] sm:$0xf]
        %v219 = vld [vmem:[%s183 + $0x10] sm:$0xf]
        %v220 = vld [vmem:[%s183 + $0x14] sm:$0xf]
        %v221 = vld [vmem:[%s183 + $0x18] sm:$0xf]
        %v222 = vld [vmem:[%s183 + $0x1c] sm:$0xf]
        %v223 = vld [vmem:[%s183 + $0x20] sm:$0xf]
        %v224 = vld [vmem:[%s183 + $0x24] sm:$0xf]
        %v225 = vld [vmem:[%s183 + $0x28] sm:$0xf]
        %v226 = vld [vmem:[%s183 + $0x2c] sm:$0xf]
        %v227 = vld [vmem:[%s183 + $0x30] sm:$0xf]
        %v228 = vld [vmem:[%s183 + $0x34] sm:$0xf]
        %v229 = vld [vmem:[%s183 + $0x38] sm:$0xf]
        %v230 = vld [vmem:[%s183 + $0x3c] sm:$0xf]
        %v231 = vld [vmem:[%s183 + $0x40] sm:$0xf]
        %v232 = vld [vmem:[%s183 + $0x44] sm:$0xf]
        %v233 = vld [vmem:[%s183 + $0x48] sm:$0xf]
        %v234 = vld [vmem:[%s183 + $0x4c] sm:$0xf]
        %v235 = vld [vmem:[%s183 + $0x50] sm:$0xf]
        %v236 = vld [vmem:[%s183 + $0x54] sm:$0xf]
        %v237 = vld [vmem:[%s183 + $0x58] sm:$0xf]
        %v238 = vld [vmem:[%s183 + $0x5c] sm:$0xf]
        %v239 = vld [vmem:[%s183 + $0x60] sm:$0xf]
        %v240 = vld [vmem:[%s183 + $0x64] sm:$0xf]
        %v241 = vld [vmem:[%s183 + $0x68] sm:$0xf]
        %v242 = vld [vmem:[%s183 + $0x6c] sm:$0xf]
        %v243 = vld [vmem:[%s183 + $0x70] sm:$0xf]
        %v244 = vld [vmem:[%s183 + $0x74] sm:$0xf]
        %v245 = vld [vmem:[%s183 + $0x78] sm:$0xf]
        %v246 = vld [vmem:[%s183 + $0x7c] sm:$0xf]
        %v247 = vld [vmem:[#allocation5] sm:$0xff]
        %v248 = vld [vmem:[#allocation5 + $0x8] sm:$0xff]
        %v249 = vld [vmem:[#allocation5 + $0x10] sm:$0xff]
        %v250 = vld [vmem:[#allocation5 + $0x18] sm:$0xff]
        %v251 = vld [vmem:[#allocation7] sm:$0xff]
        %v253 = vlaneseq
        %v254 = vshrl.u32 %v253, 7
        %v255 = vsub.s32 0, %v254
        %v256 = vrot.slane %v251, %v255
        %v257 = vlaneseq
        %v258 = vshrl.u32 %v257, 7
        %v259 = vsub.s32 1, %v258
        %v260 = vrot.slane %v251, %v259
        %v261 = vlaneseq
        %v262 = vshrl.u32 %v261, 7
        %v263 = vsub.s32 2, %v262
        %v264 = vrot.slane %v251, %v263
        %v265 = vlaneseq
        %v266 = vshrl.u32 %v265, 7
        %v267 = vsub.s32 3, %v266
        %v268 = vrot.slane %v251, %v267
        %v269 = vlaneseq
        %v270 = vshrl.u32 %v269, 7
        %v271 = vsub.s32 4, %v270
        %v272 = vrot.slane %v251, %v271
        %v273 = vlaneseq
        %v274 = vshrl.u32 %v273, 7
        %v275 = vsub.s32 5, %v274
        %v276 = vrot.slane %v251, %v275
        %v277 = vlaneseq
        %v278 = vshrl.u32 %v277, 7
        %v279 = vsub.s32 6, %v278
        %v280 = vrot.slane %v251, %v279
        %v281 = vlaneseq
        %v282 = vshrl.u32 %v281, 7
        %v283 = vsub.s32 7, %v282
        %v284 = vrot.slane %v251, %v283
        %v325 = vunpack.c.l.b16 %v215
        %v326 = vunpack.c.l.b16 %v216
        %v327 = vunpack.c.l.b16 %v217
        %v328 = vunpack.c.l.b16 %v218
        %v329 = vunpack.c.l.b16 %v219
        %v330 = vunpack.c.l.b16 %v220
        %v331 = vunpack.c.l.b16 %v221
        %v332 = vunpack.c.l.b16 %v222
        %v333 = vunpack.c.l.b16 %v223
        %v334 = vunpack.c.l.b16 %v224
        %v335 = vunpack.c.l.b16 %v225
        %v336 = vunpack.c.l.b16 %v226
        %v337 = vunpack.c.l.b16 %v227
        %v338 = vunpack.c.l.b16 %v228
        %v339 = vunpack.c.l.b16 %v229
        %v340 = vunpack.c.l.b16 %v230
        %v341 = vunpack.c.l.b16 %v231
        %v342 = vunpack.c.l.b16 %v232
        %v343 = vunpack.c.l.b16 %v233
        %v344 = vunpack.c.l.b16 %v234
        %v345 = vunpack.c.l.b16 %v235
        %v346 = vunpack.c.l.b16 %v236
        %v347 = vunpack.c.l.b16 %v237
        %v348 = vunpack.c.l.b16 %v238
        %v349 = vunpack.c.l.b16 %v239
        %v350 = vunpack.c.l.b16 %v240
        %v351 = vunpack.c.l.b16 %v241
        %v352 = vunpack.c.l.b16 %v242
        %v353 = vunpack.c.l.b16 %v243
        %v354 = vunpack.c.l.b16 %v244
        %v355 = vunpack.c.l.b16 %v245
        %v356 = vunpack.c.l.b16 %v246
        %v357 = vpack.c.b16 %v326, %v325
        %v358 = vpack.c.b16 %v328, %v327
        %v359 = vpack.c.b16 %v330, %v329
        %v360 = vpack.c.b16 %v332, %v331
        %v361 = vpack.c.b16 %v334, %v333
        %v362 = vpack.c.b16 %v336, %v335
        %v363 = vpack.c.b16 %v338, %v337
        %v364 = vpack.c.b16 %v340, %v339
        %v365 = vpack.c.b16 %v342, %v341
        %v366 = vpack.c.b16 %v344, %v343
        %v367 = vpack.c.b16 %v346, %v345
        %v368 = vpack.c.b16 %v348, %v347
        %v369 = vpack.c.b16 %v350, %v349
        %v370 = vpack.c.b16 %v352, %v351
        %v371 = vpack.c.b16 %v354, %v353
        %v372 = vpack.c.b16 %v356, %v355
        %v377 = vunpack.c.l.b16 %v247
        %v378 = vunpack.c.h.b16 %v247
        %v379 = vunpack.c.l.b16 %v248
        %v380 = vunpack.c.h.b16 %v248
        %v381 = vunpack.c.l.b16 %v249
        %v382 = vunpack.c.h.b16 %v249
        %v383 = vunpack.c.l.b16 %v250
        %v384 = vunpack.c.h.b16 %v250
        %v385 = vpack.c.b16 %v377, %v377
        %v386 = vpack.c.b16 %v378, %v378
        %v387 = vpack.c.b16 %v379, %v379
        %v388 = vpack.c.b16 %v380, %v380
        %v389 = vpack.c.b16 %v381, %v381
        %v390 = vpack.c.b16 %v382, %v382
        %v391 = vpack.c.b16 %v383, %v383
        %v392 = vpack.c.b16 %v384, %v384
        %vm393 = vcmask 64512
        %v395 = vsel %vm393, %v357, 0
        %v398 = vsel %vm393, %v358, 0
        %v401 = vsel %vm393, %v359, 0
        %v404 = vsel %vm393, %v360, 0
        %v407 = vsel %vm393, %v361, 0
        %v410 = vsel %vm393, %v362, 0
        %v413 = vsel %vm393, %v363, 0
        %v416 = vsel %vm393, %v364, 0
        %v419 = vsel %vm393, %v365, 0
        %v422 = vsel %vm393, %v366, 0
        %v425 = vsel %vm393, %v367, 0
        %v428 = vsel %vm393, %v368, 0
        %v431 = vsel %vm393, %v369, 0
        %v434 = vsel %vm393, %v370, 0
        %v437 = vsel %vm393, %v371, 0
        %v440 = vsel %vm393, %v372, 0
        %vm442 = vcmask 1043456
        %v444 = vsel %vm442, %v385, 0
        %v447 = vsel %vm442, %v386, 0
        %v450 = vsel %vm442, %v387, 0
        %v453 = vsel %vm442, %v388, 0
        %v456 = vsel %vm442, %v389, 0
        %v459 = vsel %vm442, %v390, 0
        %v462 = vsel %vm442, %v391, 0
        %v465 = vsel %vm442, %v392, 0
        %467 = vmatprep.subr.bf16.mxu0 %v447
        %468 = vmatpush1.bf16.msra.mxu0 %v444
        %469 = vmatprep.subr.bf16.mxu0 0
        %470 = vmatpush1.bf16.msra.mxu0 0
        %471 = vmatprep.subr.bf16.mxu0 0
        %472 = vmatpush1.bf16.msra.mxu0 0
        %473 = vmatprep.subr.bf16.mxu0 0
        %474 = vmatpush1.bf16.msra.mxu0 0
        %475 = vmatprep.subr.bf16.mxu0 0
        %476 = vmatpush1.bf16.msra.mxu0 0
        %477 = vmatprep.subr.bf16.mxu0 0
        %478 = vmatpush1.bf16.msra.mxu0 0
        %479 = vmatprep.subr.bf16.mxu0 0
        %480 = vmatpush1.bf16.msra.mxu0 0
        %481 = vmatprep.subr.bf16.mxu0 0
        %482 = vmatpush1.bf16.msra.mxu0 0
        %483 = vmatprep.subr.bf16.mxu0 0
        %484 = vmatpush1.bf16.msra.mxu0 0
        %485 = vmatprep.subr.bf16.mxu0 0
        %486 = vmatpush1.bf16.msra.mxu0 0
        %487 = vmatprep.subr.bf16.mxu0 0
        %488 = vmatpush1.bf16.msra.mxu0 0
        %489 = vmatprep.subr.bf16.mxu0 0
        %490 = vmatpush1.bf16.msra.mxu0 0
        %491 = vmatprep.subr.bf16.mxu0 0
        %492 = vmatpush1.bf16.msra.mxu0 0
        %493 = vmatprep.subr.bf16.mxu0 0
        %494 = vmatpush1.bf16.msra.mxu0 0
        %495 = vmatprep.subr.bf16.mxu0 0
        %496 = vmatpush1.bf16.msra.mxu0 0
        %497 = vmatprep.subr.bf16.mxu0 0
        %498 = vmatpush1.bf16.msra.mxu0 0
        %499 = vmatprep.mubr.bf16.mxu0 0
        %500 = vmatmul.mubr.bf16.gmra.mrb[0].mxu0 %v395
        %v501 = vpop.f32.mrb[0].mxu0
        %v502 = vadd.f32 %v256, %v501
        %v503 = vpop.f32.mrb[0].mxu0
        %v504 = vadd.f32 %v260, %v503
        %v505 = vpop.f32.mrb[0].mxu0
        %v506 = vadd.f32 %v256, %v505
        %v507 = vpop.f32.mrb[0].mxu0
        %v508 = vadd.f32 %v260, %v507
        %509 = vmatprep.mubr.bf16.mxu0 0
        %510 = vmatmul.mubr.bf16.gmra.mrb[0].mxu0 %v398
        %v511 = vpop.f32.mrb[0].mxu0
        %v512 = vadd.f32 %v256, %v511
        %v513 = vpop.f32.mrb[0].mxu0
        %v514 = vadd.f32 %v260, %v513
        %v515 = vpop.f32.mrb[0].mxu0
        %v516 = vadd.f32 %v256, %v515
        %v517 = vpop.f32.mrb[0].mxu0
        %v518 = vadd.f32 %v260, %v517
        %519 = vmatprep.mubr.bf16.mxu0 0
        %520 = vmatmul.mubr.bf16.gmra.mrb[0].mxu0 %v401
        %v521 = vpop.f32.mrb[0].mxu0
        %v522 = vadd.f32 %v256, %v521
        %v523 = vpop.f32.mrb[0].mxu0
        %v524 = vadd.f32 %v260, %v523
        %v525 = vpop.f32.mrb[0].mxu0
        %v526 = vadd.f32 %v256, %v525
        %v527 = vpop.f32.mrb[0].mxu0
        %v528 = vadd.f32 %v260, %v527
        %529 = vmatprep.mubr.bf16.mxu0 0
        %530 = vmatmul.mubr.bf16.gmra.mrb[0].mxu0 %v404
        %v531 = vpop.f32.mrb[0].mxu0
        %v532 = vadd.f32 %v256, %v531
        %v533 = vpop.f32.mrb[0].mxu0
        %v534 = vadd.f32 %v260, %v533
        %v535 = vpop.f32.mrb[0].mxu0
        %v536 = vadd.f32 %v256, %v535
        %v537 = vpop.f32.mrb[0].mxu0
        %v538 = vadd.f32 %v260, %v537
        %539 = vmatprep.mubr.bf16.mxu0 0
        %540 = vmatmul.mubr.bf16.gmra.mrb[0].mxu0 %v407
        %v541 = vpop.f32.mrb[0].mxu0
        %v542 = vadd.f32 %v256, %v541
        %v543 = vpop.f32.mrb[0].mxu0
        %v544 = vadd.f32 %v260, %v543
        %v545 = vpop.f32.mrb[0].mxu0
        %v546 = vadd.f32 %v256, %v545
        %v547 = vpop.f32.mrb[0].mxu0
        %v548 = vadd.f32 %v260, %v547
        %549 = vmatprep.mubr.bf16.mxu0 0
        %550 = vmatmul.mubr.bf16.gmra.mrb[0].mxu0 %v410
        %v551 = vpop.f32.mrb[0].mxu0
        %v552 = vadd.f32 %v256, %v551
        %v553 = vpop.f32.mrb[0].mxu0
        %v554 = vadd.f32 %v260, %v553
        %v555 = vpop.f32.mrb[0].mxu0
        %v556 = vadd.f32 %v256, %v555
        %v557 = vpop.f32.mrb[0].mxu0
        %v558 = vadd.f32 %v260, %v557
        %559 = vmatprep.mubr.bf16.mxu0 0
        %560 = vmatmul.mubr.bf16.gmra.mrb[0].mxu0 %v413
        %v561 = vpop.f32.mrb[0].mxu0
        %v562 = vadd.f32 %v256, %v561
        %v563 = vpop.f32.mrb[0].mxu0
        %v564 = vadd.f32 %v260, %v563
        %v565 = vpop.f32.mrb[0].mxu0
        %v566 = vadd.f32 %v256, %v565
        %v567 = vpop.f32.mrb[0].mxu0
        %v568 = vadd.f32 %v260, %v567
        %569 = vmatprep.mubr.bf16.mxu0 0
        %570 = vmatmul.mubr.bf16.gmra.mrb[0].mxu0 %v416
        %v571 = vpop.f32.mrb[0].mxu0
        %v572 = vadd.f32 %v256, %v571
        %v573 = vpop.f32.mrb[0].mxu0
        %v574 = vadd.f32 %v260, %v573
        %v575 = vpop.f32.mrb[0].mxu0
        %v576 = vadd.f32 %v256, %v575
        %v577 = vpop.f32.mrb[0].mxu0
        %v578 = vadd.f32 %v260, %v577
        %579 = vmatprep.mubr.bf16.mxu0 0
        %580 = vmatmul.mubr.bf16.gmra.mrb[0].mxu0 %v419
        %v581 = vpop.f32.mrb[0].mxu0
        %v582 = vadd.f32 %v256, %v581
        %v583 = vpop.f32.mrb[0].mxu0
        %v584 = vadd.f32 %v260, %v583
        %v585 = vpop.f32.mrb[0].mxu0
        %v586 = vadd.f32 %v256, %v585
        %v587 = vpop.f32.mrb[0].mxu0
        %v588 = vadd.f32 %v260, %v587
        %589 = vmatprep.mubr.bf16.mxu0 0
        %590 = vmatmul.mubr.bf16.gmra.mrb[0].mxu0 %v422
        %v591 = vpop.f32.mrb[0].mxu0
        %v592 = vadd.f32 %v256, %v591
        %v593 = vpop.f32.mrb[0].mxu0
        %v594 = vadd.f32 %v260, %v593
        %v595 = vpop.f32.mrb[0].mxu0
        %v596 = vadd.f32 %v256, %v595
        %v597 = vpop.f32.mrb[0].mxu0
        %v598 = vadd.f32 %v260, %v597
        %599 = vmatprep.mubr.bf16.mxu0 0
        %600 = vmatmul.mubr.bf16.gmra.mrb[0].mxu0 %v425
        %v601 = vpop.f32.mrb[0].mxu0
        %v602 = vadd.f32 %v256, %v601
        %v603 = vpop.f32.mrb[0].mxu0
        %v604 = vadd.f32 %v260, %v603
        %v605 = vpop.f32.mrb[0].mxu0
        %v606 = vadd.f32 %v256, %v605
        %v607 = vpop.f32.mrb[0].mxu0
        %v608 = vadd.f32 %v260, %v607
        %609 = vmatprep.mubr.bf16.mxu0 0
        %610 = vmatmul.mubr.bf16.gmra.mrb[0].mxu0 %v428
        %v611 = vpop.f32.mrb[0].mxu0
        %v612 = vadd.f32 %v256, %v611
        %v613 = vpop.f32.mrb[0].mxu0
        %v614 = vadd.f32 %v260, %v613
        %v615 = vpop.f32.mrb[0].mxu0
        %v616 = vadd.f32 %v256, %v615
        %v617 = vpop.f32.mrb[0].mxu0
        %v618 = vadd.f32 %v260, %v617
        %619 = vmatprep.mubr.bf16.mxu0 0
        %620 = vmatmul.mubr.bf16.gmra.mrb[0].mxu0 %v431
        %v621 = vpop.f32.mrb[0].mxu0
        %v622 = vadd.f32 %v256, %v621
        %v623 = vpop.f32.mrb[0].mxu0
        %v624 = vadd.f32 %v260, %v623
        %v625 = vpop.f32.mrb[0].mxu0
        %v626 = vadd.f32 %v256, %v625
        %v627 = vpop.f32.mrb[0].mxu0
        %v628 = vadd.f32 %v260, %v627
        %629 = vmatprep.mubr.bf16.mxu0 0
        %630 = vmatmul.mubr.bf16.gmra.mrb[0].mxu0 %v434
        %v631 = vpop.f32.mrb[0].mxu0
        %v632 = vadd.f32 %v256, %v631
        %v633 = vpop.f32.mrb[0].mxu0
        %v634 = vadd.f32 %v260, %v633
        %v635 = vpop.f32.mrb[0].mxu0
        %v636 = vadd.f32 %v256, %v635
        %v637 = vpop.f32.mrb[0].mxu0
        %v638 = vadd.f32 %v260, %v637
        %639 = vmatprep.mubr.bf16.mxu0 0
        %640 = vmatmul.mubr.bf16.gmra.mrb[0].mxu0 %v437
        %v641 = vpop.f32.mrb[0].mxu0
        %v642 = vadd.f32 %v256, %v641
        %v643 = vpop.f32.mrb[0].mxu0
        %v644 = vadd.f32 %v260, %v643
        %v645 = vpop.f32.mrb[0].mxu0
        %v646 = vadd.f32 %v256, %v645
        %v647 = vpop.f32.mrb[0].mxu0
        %v648 = vadd.f32 %v260, %v647
        %649 = vmatprep.mubr.bf16.mxu0 0
        %650 = vmatmul.mubr.bf16.gmra.mrb[0].mxu0 %v440
        %v651 = vpop.f32.mrb[0].mxu0
        %v652 = vadd.f32 %v256, %v651
        %v653 = vpop.f32.mrb[0].mxu0
        %v654 = vadd.f32 %v260, %v653
        %v655 = vpop.f32.mrb[0].mxu0
        %v656 = vadd.f32 %v256, %v655
        %v657 = vpop.f32.mrb[0].mxu0
        %v658 = vadd.f32 %v260, %v657
        %659 = vdwg.mxu0
        %660 = vmatprep.subr.bf16.mxu0 %v453
        %661 = vmatpush1.bf16.msra.mxu0 %v450
        %662 = vmatprep.subr.bf16.mxu0 0
        %663 = vmatpush1.bf16.msra.mxu0 0
        %664 = vmatprep.subr.bf16.mxu0 0
        %665 = vmatpush1.bf16.msra.mxu0 0
        %666 = vmatprep.subr.bf16.mxu0 0
        %667 = vmatpush1.bf16.msra.mxu0 0
        %668 = vmatprep.subr.bf16.mxu0 0
        %669 = vmatpush1.bf16.msra.mxu0 0
        %670 = vmatprep.subr.bf16.mxu0 0
        %671 = vmatpush1.bf16.msra.mxu0 0
        %672 = vmatprep.subr.bf16.mxu0 0
        %673 = vmatpush1.bf16.msra.mxu0 0
        %674 = vmatprep.subr.bf16.mxu0 0
        %675 = vmatpush1.bf16.msra.mxu0 0
        %676 = vmatprep.subr.bf16.mxu0 0
        %677 = vmatpush1.bf16.msra.mxu0 0
        %678 = vmatprep.subr.bf16.mxu0 0
        %679 = vmatpush1.bf16.msra.mxu0 0
        %680 = vmatprep.subr.bf16.mxu0 0
        %681 = vmatpush1.bf16.msra.mxu0 0
        %682 = vmatprep.subr.bf16.mxu0 0
        %683 = vmatpush1.bf16.msra.mxu0 0
        %684 = vmatprep.subr.bf16.mxu0 0
        %685 = vmatpush1.bf16.msra.mxu0 0
        %686 = vmatprep.subr.bf16.mxu0 0
        %687 = vmatpush1.bf16.msra.mxu0 0
        %688 = vmatprep.subr.bf16.mxu0 0
        %689 = vmatpush1.bf16.msra.mxu0 0
        %690 = vmatprep.subr.bf16.mxu0 0
        %691 = vmatpush1.bf16.msra.mxu0 0
        %692 = vmatprep.mubr.bf16.mxu0 0
        %693 = vmatmul.mubr.bf16.gmra.mrb[0].mxu0 %v395
        %v694 = vpop.f32.mrb[0].mxu0
        %v695 = vadd.f32 %v264, %v694
        %v696 = vpop.f32.mrb[0].mxu0
        %v697 = vadd.f32 %v268, %v696
        %v698 = vpop.f32.mrb[0].mxu0
        %v699 = vadd.f32 %v264, %v698
        %v700 = vpop.f32.mrb[0].mxu0
        %v701 = vadd.f32 %v268, %v700
        %702 = vmatprep.mubr.bf16.mxu0 0
        %703 = vmatmul.mubr.bf16.gmra.mrb[0].mxu0 %v398
        %v704 = vpop.f32.mrb[0].mxu0
        %v705 = vadd.f32 %v264, %v704
        %v706 = vpop.f32.mrb[0].mxu0
        %v707 = vadd.f32 %v268, %v706
        %v708 = vpop.f32.mrb[0].mxu0
        %v709 = vadd.f32 %v264, %v708
        %v710 = vpop.f32.mrb[0].mxu0
        %v711 = vadd.f32 %v268, %v710
        %712 = vmatprep.mubr.bf16.mxu0 0
        %713 = vmatmul.mubr.bf16.gmra.mrb[0].mxu0 %v401
        %v714 = vpop.f32.mrb[0].mxu0
        %v715 = vadd.f32 %v264, %v714
        %v716 = vpop.f32.mrb[0].mxu0
        %v717 = vadd.f32 %v268, %v716
        %v718 = vpop.f32.mrb[0].mxu0
        %v719 = vadd.f32 %v264, %v718
        %v720 = vpop.f32.mrb[0].mxu0
        %v721 = vadd.f32 %v268, %v720
        %722 = vmatprep.mubr.bf16.mxu0 0
        %723 = vmatmul.mubr.bf16.gmra.mrb[0].mxu0 %v404
        %v724 = vpop.f32.mrb[0].mxu0
        %v725 = vadd.f32 %v264, %v724
        %v726 = vpop.f32.mrb[0].mxu0
        %v727 = vadd.f32 %v268, %v726
        %v728 = vpop.f32.mrb[0].mxu0
        %v729 = vadd.f32 %v264, %v728
        %v730 = vpop.f32.mrb[0].mxu0
        %v731 = vadd.f32 %v268, %v730
        %732 = vmatprep.mubr.bf16.mxu0 0
        %733 = vmatmul.mubr.bf16.gmra.mrb[0].mxu0 %v407
        %v734 = vpop.f32.mrb[0].mxu0
        %v735 = vadd.f32 %v264, %v734
        %v736 = vpop.f32.mrb[0].mxu0
        %v737 = vadd.f32 %v268, %v736
        %v738 = vpop.f32.mrb[0].mxu0
        %v739 = vadd.f32 %v264, %v738
        %v740 = vpop.f32.mrb[0].mxu0
        %v741 = vadd.f32 %v268, %v740
        %742 = vmatprep.mubr.bf16.mxu0 0
        %743 = vmatmul.mubr.bf16.gmra.mrb[0].mxu0 %v410
        %v744 = vpop.f32.mrb[0].mxu0
        %v745 = vadd.f32 %v264, %v744
        %v746 = vpop.f32.mrb[0].mxu0
        %v747 = vadd.f32 %v268, %v746
        %v748 = vpop.f32.mrb[0].mxu0
        %v749 = vadd.f32 %v264, %v748
        %v750 = vpop.f32.mrb[0].mxu0
        %v751 = vadd.f32 %v268, %v750
        %752 = vmatprep.mubr.bf16.mxu0 0
        %753 = vmatmul.mubr.bf16.gmra.mrb[0].mxu0 %v413
        %v754 = vpop.f32.mrb[0].mxu0
        %v755 = vadd.f32 %v264, %v754
        %v756 = vpop.f32.mrb[0].mxu0
        %v757 = vadd.f32 %v268, %v756
        %v758 = vpop.f32.mrb[0].mxu0
        %v759 = vadd.f32 %v264, %v758
        %v760 = vpop.f32.mrb[0].mxu0
        %v761 = vadd.f32 %v268, %v760
        %762 = vmatprep.mubr.bf16.mxu0 0
        %763 = vmatmul.mubr.bf16.gmra.mrb[0].mxu0 %v416
        %v764 = vpop.f32.mrb[0].mxu0
        %v765 = vadd.f32 %v264, %v764
        %v766 = vpop.f32.mrb[0].mxu0
        %v767 = vadd.f32 %v268, %v766
        %v768 = vpop.f32.mrb[0].mxu0
        %v769 = vadd.f32 %v264, %v768
        %v770 = vpop.f32.mrb[0].mxu0
        %v771 = vadd.f32 %v268, %v770
        %772 = vmatprep.mubr.bf16.mxu0 0
        %773 = vmatmul.mubr.bf16.gmra.mrb[0].mxu0 %v419
        %v774 = vpop.f32.mrb[0].mxu0
        %v775 = vadd.f32 %v264, %v774
        %v776 = vpop.f32.mrb[0].mxu0
        %v777 = vadd.f32 %v268, %v776
        %v778 = vpop.f32.mrb[0].mxu0
        %v779 = vadd.f32 %v264, %v778
        %v780 = vpop.f32.mrb[0].mxu0
        %v781 = vadd.f32 %v268, %v780
        %782 = vmatprep.mubr.bf16.mxu0 0
        %783 = vmatmul.mubr.bf16.gmra.mrb[0].mxu0 %v422
        %v784 = vpop.f32.mrb[0].mxu0
        %v785 = vadd.f32 %v264, %v784
        %v786 = vpop.f32.mrb[0].mxu0
        %v787 = vadd.f32 %v268, %v786
        %v788 = vpop.f32.mrb[0].mxu0
        %v789 = vadd.f32 %v264, %v788
        %v790 = vpop.f32.mrb[0].mxu0
        %v791 = vadd.f32 %v268, %v790
        %792 = vmatprep.mubr.bf16.mxu0 0
        %793 = vmatmul.mubr.bf16.gmra.mrb[0].mxu0 %v425
        %v794 = vpop.f32.mrb[0].mxu0
        %v795 = vadd.f32 %v264, %v794
        %v796 = vpop.f32.mrb[0].mxu0
        %v797 = vadd.f32 %v268, %v796
        %v798 = vpop.f32.mrb[0].mxu0
        %v799 = vadd.f32 %v264, %v798
        %v800 = vpop.f32.mrb[0].mxu0
        %v801 = vadd.f32 %v268, %v800
        %802 = vmatprep.mubr.bf16.mxu0 0
        %803 = vmatmul.mubr.bf16.gmra.mrb[0].mxu0 %v428
        %v804 = vpop.f32.mrb[0].mxu0
        %v805 = vadd.f32 %v264, %v804
        %v806 = vpop.f32.mrb[0].mxu0
        %v807 = vadd.f32 %v268, %v806
        %v808 = vpop.f32.mrb[0].mxu0
        %v809 = vadd.f32 %v264, %v808
        %v810 = vpop.f32.mrb[0].mxu0
        %v811 = vadd.f32 %v268, %v810
        %812 = vmatprep.mubr.bf16.mxu0 0
        %813 = vmatmul.mubr.bf16.gmra.mrb[0].mxu0 %v431
        %v814 = vpop.f32.mrb[0].mxu0
        %v815 = vadd.f32 %v264, %v814
        %v816 = vpop.f32.mrb[0].mxu0
        %v817 = vadd.f32 %v268, %v816
        %v818 = vpop.f32.mrb[0].mxu0
        %v819 = vadd.f32 %v264, %v818
        %v820 = vpop.f32.mrb[0].mxu0
        %v821 = vadd.f32 %v268, %v820
        %822 = vmatprep.mubr.bf16.mxu0 0
        %823 = vmatmul.mubr.bf16.gmra.mrb[0].mxu0 %v434
        %v824 = vpop.f32.mrb[0].mxu0
        %v825 = vadd.f32 %v264, %v824
        %v826 = vpop.f32.mrb[0].mxu0
        %v827 = vadd.f32 %v268, %v826
        %v828 = vpop.f32.mrb[0].mxu0
        %v829 = vadd.f32 %v264, %v828
        %v830 = vpop.f32.mrb[0].mxu0
        %v831 = vadd.f32 %v268, %v830
        %832 = vmatprep.mubr.bf16.mxu0 0
        %833 = vmatmul.mubr.bf16.gmra.mrb[0].mxu0 %v437
        %v834 = vpop.f32.mrb[0].mxu0
        %v835 = vadd.f32 %v264, %v834
        %v836 = vpop.f32.mrb[0].mxu0
        %v837 = vadd.f32 %v268, %v836
        %v838 = vpop.f32.mrb[0].mxu0
        %v839 = vadd.f32 %v264, %v838
        %v840 = vpop.f32.mrb[0].mxu0
        %v841 = vadd.f32 %v268, %v840
        %842 = vmatprep.mubr.bf16.mxu0 0
        %843 = vmatmul.mubr.bf16.gmra.mrb[0].mxu0 %v440
        %v844 = vpop.f32.mrb[0].mxu0
        %v845 = vadd.f32 %v264, %v844
        %v846 = vpop.f32.mrb[0].mxu0
        %v847 = vadd.f32 %v268, %v846
        %v848 = vpop.f32.mrb[0].mxu0
        %v849 = vadd.f32 %v264, %v848
        %v850 = vpop.f32.mrb[0].mxu0
        %v851 = vadd.f32 %v268, %v850
        %852 = vdwg.mxu0
        %853 = vmatprep.subr.bf16.mxu0 %v459
        %854 = vmatpush1.bf16.msra.mxu0 %v456
        %855 = vmatprep.subr.bf16.mxu0 0
        %856 = vmatpush1.bf16.msra.mxu0 0
        %857 = vmatprep.subr.bf16.mxu0 0
        %858 = vmatpush1.bf16.msra.mxu0 0
        %859 = vmatprep.subr.bf16.mxu0 0
        %860 = vmatpush1.bf16.msra.mxu0 0
        %861 = vmatprep.subr.bf16.mxu0 0
        %862 = vmatpush1.bf16.msra.mxu0 0
        %863 = vmatprep.subr.bf16.mxu0 0
        %864 = vmatpush1.bf16.msra.mxu0 0
        %865 = vmatprep.subr.bf16.mxu0 0
        %866 = vmatpush1.bf16.msra.mxu0 0
        %867 = vmatprep.subr.bf16.mxu0 0
        %868 = vmatpush1.bf16.msra.mxu0 0
        %869 = vmatprep.subr.bf16.mxu0 0
        %870 = vmatpush1.bf16.msra.mxu0 0
        %871 = vmatprep.subr.bf16.mxu0 0
        %872 = vmatpush1.bf16.msra.mxu0 0
        %873 = vmatprep.subr.bf16.mxu0 0
        %874 = vmatpush1.bf16.msra.mxu0 0
        %875 = vmatprep.subr.bf16.mxu0 0
        %876 = vmatpush1.bf16.msra.mxu0 0
        %877 = vmatprep.subr.bf16.mxu0 0
        %878 = vmatpush1.bf16.msra.mxu0 0
        %879 = vmatprep.subr.bf16.mxu0 0
        %880 = vmatpush1.bf16.msra.mxu0 0
        %881 = vmatprep.subr.bf16.mxu0 0
        %882 = vmatpush1.bf16.msra.mxu0 0
        %883 = vmatprep.subr.bf16.mxu0 0
        %884 = vmatpush1.bf16.msra.mxu0 0
        %885 = vmatprep.mubr.bf16.mxu0 0
        %886 = vmatmul.mubr.bf16.gmra.mrb[0].mxu0 %v395
        %v887 = vpop.f32.mrb[0].mxu0
        %v888 = vadd.f32 %v272, %v887
        %v889 = vpop.f32.mrb[0].mxu0
        %v890 = vadd.f32 %v276, %v889
        %v891 = vpop.f32.mrb[0].mxu0
        %v892 = vadd.f32 %v272, %v891
        %v893 = vpop.f32.mrb[0].mxu0
        %v894 = vadd.f32 %v276, %v893
        %895 = vmatprep.mubr.bf16.mxu0 0
        %896 = vmatmul.mubr.bf16.gmra.mrb[0].mxu0 %v398
        %v897 = vpop.f32.mrb[0].mxu0
        %v898 = vadd.f32 %v272, %v897
        %v899 = vpop.f32.mrb[0].mxu0
        %v900 = vadd.f32 %v276, %v899
        %v901 = vpop.f32.mrb[0].mxu0
        %v902 = vadd.f32 %v272, %v901
        %v903 = vpop.f32.mrb[0].mxu0
        %v904 = vadd.f32 %v276, %v903
        %905 = vmatprep.mubr.bf16.mxu0 0
        %906 = vmatmul.mubr.bf16.gmra.mrb[0].mxu0 %v401
        %v907 = vpop.f32.mrb[0].mxu0
        %v908 = vadd.f32 %v272, %v907
        %v909 = vpop.f32.mrb[0].mxu0
        %v910 = vadd.f32 %v276, %v909
        %v911 = vpop.f32.mrb[0].mxu0
        %v912 = vadd.f32 %v272, %v911
        %v913 = vpop.f32.mrb[0].mxu0
        %v914 = vadd.f32 %v276, %v913
        %915 = vmatprep.mubr.bf16.mxu0 0
        %916 = vmatmul.mubr.bf16.gmra.mrb[0].mxu0 %v404
        %v917 = vpop.f32.mrb[0].mxu0
        %v918 = vadd.f32 %v272, %v917
        %v919 = vpop.f32.mrb[0].mxu0
        %v920 = vadd.f32 %v276, %v919
        %v921 = vpop.f32.mrb[0].mxu0
        %v922 = vadd.f32 %v272, %v921
        %v923 = vpop.f32.mrb[0].mxu0
        %v924 = vadd.f32 %v276, %v923
        %925 = vmatprep.mubr.bf16.mxu0 0
        %926 = vmatmul.mubr.bf16.gmra.mrb[0].mxu0 %v407
        %v927 = vpop.f32.mrb[0].mxu0
        %v928 = vadd.f32 %v272, %v927
        %v929 = vpop.f32.mrb[0].mxu0
        %v930 = vadd.f32 %v276, %v929
        %v931 = vpop.f32.mrb[0].mxu0
        %v932 = vadd.f32 %v272, %v931
        %v933 = vpop.f32.mrb[0].mxu0
        %v934 = vadd.f32 %v276, %v933
        %935 = vmatprep.mubr.bf16.mxu0 0
        %936 = vmatmul.mubr.bf16.gmra.mrb[0].mxu0 %v410
        %v937 = vpop.f32.mrb[0].mxu0
        %v938 = vadd.f32 %v272, %v937
        %v939 = vpop.f32.mrb[0].mxu0
        %v940 = vadd.f32 %v276, %v939
        %v941 = vpop.f32.mrb[0].mxu0
        %v942 = vadd.f32 %v272, %v941
        %v943 = vpop.f32.mrb[0].mxu0
        %v944 = vadd.f32 %v276, %v943
        %945 = vmatprep.mubr.bf16.mxu0 0
        %946 = vmatmul.mubr.bf16.gmra.mrb[0].mxu0 %v413
        %v947 = vpop.f32.mrb[0].mxu0
        %v948 = vadd.f32 %v272, %v947
        %v949 = vpop.f32.mrb[0].mxu0
        %v950 = vadd.f32 %v276, %v949
        %v951 = vpop.f32.mrb[0].mxu0
        %v952 = vadd.f32 %v272, %v951
        %v953 = vpop.f32.mrb[0].mxu0
        %v954 = vadd.f32 %v276, %v953
        %955 = vmatprep.mubr.bf16.mxu0 0
        %956 = vmatmul.mubr.bf16.gmra.mrb[0].mxu0 %v416
        %v957 = vpop.f32.mrb[0].mxu0
        %v958 = vadd.f32 %v272, %v957
        %v959 = vpop.f32.mrb[0].mxu0
        %v960 = vadd.f32 %v276, %v959
        %v961 = vpop.f32.mrb[0].mxu0
        %v962 = vadd.f32 %v272, %v961
        %v963 = vpop.f32.mrb[0].mxu0
        %v964 = vadd.f32 %v276, %v963
        %965 = vmatprep.mubr.bf16.mxu0 0
        %966 = vmatmul.mubr.bf16.gmra.mrb[0].mxu0 %v419
        %v967 = vpop.f32.mrb[0].mxu0
        %v968 = vadd.f32 %v272, %v967
        %v969 = vpop.f32.mrb[0].mxu0
        %v970 = vadd.f32 %v276, %v969
        %v971 = vpop.f32.mrb[0].mxu0
        %v972 = vadd.f32 %v272, %v971
        %v973 = vpop.f32.mrb[0].mxu0
        %v974 = vadd.f32 %v276, %v973
        %975 = vmatprep.mubr.bf16.mxu0 0
        %976 = vmatmul.mubr.bf16.gmra.mrb[0].mxu0 %v422
        %v977 = vpop.f32.mrb[0].mxu0
        %v978 = vadd.f32 %v272, %v977
        %v979 = vpop.f32.mrb[0].mxu0
        %v980 = vadd.f32 %v276, %v979
        %v981 = vpop.f32.mrb[0].mxu0
        %v982 = vadd.f32 %v272, %v981
        %v983 = vpop.f32.mrb[0].mxu0
        %v984 = vadd.f32 %v276, %v983
        %985 = vmatprep.mubr.bf16.mxu0 0
        %986 = vmatmul.mubr.bf16.gmra.mrb[0].mxu0 %v425
        %v987 = vpop.f32.mrb[0].mxu0
        %v988 = vadd.f32 %v272, %v987
        %v989 = vpop.f32.mrb[0].mxu0
        %v990 = vadd.f32 %v276, %v989
        %v991 = vpop.f32.mrb[0].mxu0
        %v992 = vadd.f32 %v272, %v991
        %v993 = vpop.f32.mrb[0].mxu0
        %v994 = vadd.f32 %v276, %v993
        %995 = vmatprep.mubr.bf16.mxu0 0
        %996 = vmatmul.mubr.bf16.gmra.mrb[0].mxu0 %v428
        %v997 = vpop.f32.mrb[0].mxu0
        %v998 = vadd.f32 %v272, %v997
        %v999 = vpop.f32.mrb[0].mxu0
        %v1000 = vadd.f32 %v276, %v999
        %v1001 = vpop.f32.mrb[0].mxu0
        %v1002 = vadd.f32 %v272, %v1001
        %v1003 = vpop.f32.mrb[0].mxu0
        %v1004 = vadd.f32 %v276, %v1003
        %1005 = vmatprep.mubr.bf16.mxu0 0
        %1006 = vmatmul.mubr.bf16.gmra.mrb[0].mxu0 %v431
        %v1007 = vpop.f32.mrb[0].mxu0
        %v1008 = vadd.f32 %v272, %v1007
        %v1009 = vpop.f32.mrb[0].mxu0
        %v1010 = vadd.f32 %v276, %v1009
        %v1011 = vpop.f32.mrb[0].mxu0
        %v1012 = vadd.f32 %v272, %v1011
        %v1013 = vpop.f32.mrb[0].mxu0
        %v1014 = vadd.f32 %v276, %v1013
        %1015 = vmatprep.mubr.bf16.mxu0 0
        %1016 = vmatmul.mubr.bf16.gmra.mrb[0].mxu0 %v434
        %v1017 = vpop.f32.mrb[0].mxu0
        %v1018 = vadd.f32 %v272, %v1017
        %v1019 = vpop.f32.mrb[0].mxu0
        %v1020 = vadd.f32 %v276, %v1019
        %v1021 = vpop.f32.mrb[0].mxu0
        %v1022 = vadd.f32 %v272, %v1021
        %v1023 = vpop.f32.mrb[0].mxu0
        %v1024 = vadd.f32 %v276, %v1023
        %1025 = vmatprep.mubr.bf16.mxu0 0
        %1026 = vmatmul.mubr.bf16.gmra.mrb[0].mxu0 %v437
        %v1027 = vpop.f32.mrb[0].mxu0
        %v1028 = vadd.f32 %v272, %v1027
        %v1029 = vpop.f32.mrb[0].mxu0
        %v1030 = vadd.f32 %v276, %v1029
        %v1031 = vpop.f32.mrb[0].mxu0
        %v1032 = vadd.f32 %v272, %v1031
        %v1033 = vpop.f32.mrb[0].mxu0
        %v1034 = vadd.f32 %v276, %v1033
        %1035 = vmatprep.mubr.bf16.mxu0 0
        %1036 = vmatmul.mubr.bf16.gmra.mrb[0].mxu0 %v440
        %v1037 = vpop.f32.mrb[0].mxu0
        %v1038 = vadd.f32 %v272, %v1037
        %v1039 = vpop.f32.mrb[0].mxu0
        %v1040 = vadd.f32 %v276, %v1039
        %v1041 = vpop.f32.mrb[0].mxu0
        %v1042 = vadd.f32 %v272, %v1041
        %v1043 = vpop.f32.mrb[0].mxu0
        %v1044 = vadd.f32 %v276, %v1043
        %1045 = vdwg.mxu0
        %1046 = vmatprep.subr.bf16.mxu0 %v465
        %1047 = vmatpush1.bf16.msra.mxu0 %v462
        %1048 = vmatprep.subr.bf16.mxu0 0
        %1049 = vmatpush1.bf16.msra.mxu0 0
        %1050 = vmatprep.subr.bf16.mxu0 0
        %1051 = vmatpush1.bf16.msra.mxu0 0
        %1052 = vmatprep.subr.bf16.mxu0 0
        %1053 = vmatpush1.bf16.msra.mxu0 0
        %1054 = vmatprep.subr.bf16.mxu0 0
        %1055 = vmatpush1.bf16.msra.mxu0 0
        %1056 = vmatprep.subr.bf16.mxu0 0
        %1057 = vmatpush1.bf16.msra.mxu0 0
        %1058 = vmatprep.subr.bf16.mxu0 0
        %1059 = vmatpush1.bf16.msra.mxu0 0
        %1060 = vmatprep.subr.bf16.mxu0 0
        %1061 = vmatpush1.bf16.msra.mxu0 0
        %1062 = vmatprep.subr.bf16.mxu0 0
        %1063 = vmatpush1.bf16.msra.mxu0 0
        %1064 = vmatprep.subr.bf16.mxu0 0
        %1065 = vmatpush1.bf16.msra.mxu0 0
        %1066 = vmatprep.subr.bf16.mxu0 0
        %1067 = vmatpush1.bf16.msra.mxu0 0
        %1068 = vmatprep.subr.bf16.mxu0 0
        %1069 = vmatpush1.bf16.msra.mxu0 0
        %1070 = vmatprep.subr.bf16.mxu0 0
        %1071 = vmatpush1.bf16.msra.mxu0 0
        %1072 = vmatprep.subr.bf16.mxu0 0
        %1073 = vmatpush1.bf16.msra.mxu0 0
        %1074 = vmatprep.subr.bf16.mxu0 0
        %1075 = vmatpush1.bf16.msra.mxu0 0
        %1076 = vmatprep.subr.bf16.mxu0 0
        %1077 = vmatpush1.bf16.msra.mxu0 0
        %1078 = vmatprep.mubr.bf16.mxu0 0
        %1079 = vmatmul.mubr.bf16.gmra.mrb[0].mxu0 %v395
        %v1080 = vpop.f32.mrb[0].mxu0
        %v1081 = vadd.f32 %v280, %v1080
        %v1082 = vpop.f32.mrb[0].mxu0
        %v1083 = vadd.f32 %v284, %v1082
        %v1084 = vpop.f32.mrb[0].mxu0
        %v1085 = vadd.f32 %v280, %v1084
        %v1086 = vpop.f32.mrb[0].mxu0
        %v1087 = vadd.f32 %v284, %v1086
        %1088 = vmatprep.mubr.bf16.mxu0 0
        %1089 = vmatmul.mubr.bf16.gmra.mrb[0].mxu0 %v398
        %v1090 = vpop.f32.mrb[0].mxu0
        %v1091 = vadd.f32 %v280, %v1090
        %v1092 = vpop.f32.mrb[0].mxu0
        %v1093 = vadd.f32 %v284, %v1092
        %v1094 = vpop.f32.mrb[0].mxu0
        %v1095 = vadd.f32 %v280, %v1094
        %v1096 = vpop.f32.mrb[0].mxu0
        %v1097 = vadd.f32 %v284, %v1096
        %1098 = vmatprep.mubr.bf16.mxu0 0
        %1099 = vmatmul.mubr.bf16.gmra.mrb[0].mxu0 %v401
        %v1100 = vpop.f32.mrb[0].mxu0
        %v1101 = vadd.f32 %v280, %v1100
        %v1102 = vpop.f32.mrb[0].mxu0
        %v1103 = vadd.f32 %v284, %v1102
        %v1104 = vpop.f32.mrb[0].mxu0
        %v1105 = vadd.f32 %v280, %v1104
        %v1106 = vpop.f32.mrb[0].mxu0
        %v1107 = vadd.f32 %v284, %v1106
        %1108 = vmatprep.mubr.bf16.mxu0 0
        %1109 = vmatmul.mubr.bf16.gmra.mrb[0].mxu0 %v404
        %v1110 = vpop.f32.mrb[0].mxu0
        %v1111 = vadd.f32 %v280, %v1110
        %v1112 = vpop.f32.mrb[0].mxu0
        %v1113 = vadd.f32 %v284, %v1112
        %v1114 = vpop.f32.mrb[0].mxu0
        %v1115 = vadd.f32 %v280, %v1114
        %v1116 = vpop.f32.mrb[0].mxu0
        %v1117 = vadd.f32 %v284, %v1116
        %1118 = vmatprep.mubr.bf16.mxu0 0
        %1119 = vmatmul.mubr.bf16.gmra.mrb[0].mxu0 %v407
        %v1120 = vpop.f32.mrb[0].mxu0
        %v1121 = vadd.f32 %v280, %v1120
        %v1122 = vpop.f32.mrb[0].mxu0
        %v1123 = vadd.f32 %v284, %v1122
        %v1124 = vpop.f32.mrb[0].mxu0
        %v1125 = vadd.f32 %v280, %v1124
        %v1126 = vpop.f32.mrb[0].mxu0
        %v1127 = vadd.f32 %v284, %v1126
        %1128 = vmatprep.mubr.bf16.mxu0 0
        %1129 = vmatmul.mubr.bf16.gmra.mrb[0].mxu0 %v410
        %v1130 = vpop.f32.mrb[0].mxu0
        %v1131 = vadd.f32 %v280, %v1130
        %v1132 = vpop.f32.mrb[0].mxu0
        %v1133 = vadd.f32 %v284, %v1132
        %v1134 = vpop.f32.mrb[0].mxu0
        %v1135 = vadd.f32 %v280, %v1134
        %v1136 = vpop.f32.mrb[0].mxu0
        %v1137 = vadd.f32 %v284, %v1136
        %1138 = vmatprep.mubr.bf16.mxu0 0
        %1139 = vmatmul.mubr.bf16.gmra.mrb[0].mxu0 %v413
        %v1140 = vpop.f32.mrb[0].mxu0
        %v1141 = vadd.f32 %v280, %v1140
        %v1142 = vpop.f32.mrb[0].mxu0
        %v1143 = vadd.f32 %v284, %v1142
        %v1144 = vpop.f32.mrb[0].mxu0
        %v1145 = vadd.f32 %v280, %v1144
        %v1146 = vpop.f32.mrb[0].mxu0
        %v1147 = vadd.f32 %v284, %v1146
        %1148 = vmatprep.mubr.bf16.mxu0 0
        %1149 = vmatmul.mubr.bf16.gmra.mrb[0].mxu0 %v416
        %v1150 = vpop.f32.mrb[0].mxu0
        %v1151 = vadd.f32 %v280, %v1150
        %v1152 = vpop.f32.mrb[0].mxu0
        %v1153 = vadd.f32 %v284, %v1152
        %v1154 = vpop.f32.mrb[0].mxu0
        %v1155 = vadd.f32 %v280, %v1154
        %v1156 = vpop.f32.mrb[0].mxu0
        %v1157 = vadd.f32 %v284, %v1156
        %1158 = vmatprep.mubr.bf16.mxu0 0
        %1159 = vmatmul.mubr.bf16.gmra.mrb[0].mxu0 %v419
        %v1160 = vpop.f32.mrb[0].mxu0
        %v1161 = vadd.f32 %v280, %v1160
        %v1162 = vpop.f32.mrb[0].mxu0
        %v1163 = vadd.f32 %v284, %v1162
        %v1164 = vpop.f32.mrb[0].mxu0
        %v1165 = vadd.f32 %v280, %v1164
        %v1166 = vpop.f32.mrb[0].mxu0
        %v1167 = vadd.f32 %v284, %v1166
        %1168 = vmatprep.mubr.bf16.mxu0 0
        %1169 = vmatmul.mubr.bf16.gmra.mrb[0].mxu0 %v422
        %v1170 = vpop.f32.mrb[0].mxu0
        %v1171 = vadd.f32 %v280, %v1170
        %v1172 = vpop.f32.mrb[0].mxu0
        %v1173 = vadd.f32 %v284, %v1172
        %v1174 = vpop.f32.mrb[0].mxu0
        %v1175 = vadd.f32 %v280, %v1174
        %v1176 = vpop.f32.mrb[0].mxu0
        %v1177 = vadd.f32 %v284, %v1176
        %1178 = vmatprep.mubr.bf16.mxu0 0
        %1179 = vmatmul.mubr.bf16.gmra.mrb[0].mxu0 %v425
        %v1180 = vpop.f32.mrb[0].mxu0
        %v1181 = vadd.f32 %v280, %v1180
        %v1182 = vpop.f32.mrb[0].mxu0
        %v1183 = vadd.f32 %v284, %v1182
        %v1184 = vpop.f32.mrb[0].mxu0
        %v1185 = vadd.f32 %v280, %v1184
        %v1186 = vpop.f32.mrb[0].mxu0
        %v1187 = vadd.f32 %v284, %v1186
        %1188 = vmatprep.mubr.bf16.mxu0 0
        %1189 = vmatmul.mubr.bf16.gmra.mrb[0].mxu0 %v428
        %v1190 = vpop.f32.mrb[0].mxu0
        %v1191 = vadd.f32 %v280, %v1190
        %v1192 = vpop.f32.mrb[0].mxu0
        %v1193 = vadd.f32 %v284, %v1192
        %v1194 = vpop.f32.mrb[0].mxu0
        %v1195 = vadd.f32 %v280, %v1194
        %v1196 = vpop.f32.mrb[0].mxu0
        %v1197 = vadd.f32 %v284, %v1196
        %1198 = vmatprep.mubr.bf16.mxu0 0
        %1199 = vmatmul.mubr.bf16.gmra.mrb[0].mxu0 %v431
        %v1200 = vpop.f32.mrb[0].mxu0
        %v1201 = vadd.f32 %v280, %v1200
        %v1202 = vpop.f32.mrb[0].mxu0
        %v1203 = vadd.f32 %v284, %v1202
        %v1204 = vpop.f32.mrb[0].mxu0
        %v1205 = vadd.f32 %v280, %v1204
        %v1206 = vpop.f32.mrb[0].mxu0
        %v1207 = vadd.f32 %v284, %v1206
        %1208 = vmatprep.mubr.bf16.mxu0 0
        %1209 = vmatmul.mubr.bf16.gmra.mrb[0].mxu0 %v434
        %v1210 = vpop.f32.mrb[0].mxu0
        %v1211 = vadd.f32 %v280, %v1210
        %v1212 = vpop.f32.mrb[0].mxu0
        %v1213 = vadd.f32 %v284, %v1212
        %v1214 = vpop.f32.mrb[0].mxu0
        %v1215 = vadd.f32 %v280, %v1214
        %v1216 = vpop.f32.mrb[0].mxu0
        %v1217 = vadd.f32 %v284, %v1216
        %1218 = vmatprep.mubr.bf16.mxu0 0
        %1219 = vmatmul.mubr.bf16.gmra.mrb[0].mxu0 %v437
        %v1220 = vpop.f32.mrb[0].mxu0
        %v1221 = vadd.f32 %v280, %v1220
        %v1222 = vpop.f32.mrb[0].mxu0
        %v1223 = vadd.f32 %v284, %v1222
        %v1224 = vpop.f32.mrb[0].mxu0
        %v1225 = vadd.f32 %v280, %v1224
        %v1226 = vpop.f32.mrb[0].mxu0
        %v1227 = vadd.f32 %v284, %v1226
        %1228 = vmatprep.mubr.bf16.mxu0 0
        %1229 = vmatmul.mubr.bf16.gmra.mrb[0].mxu0 %v440
        %v1230 = vpop.f32.mrb[0].mxu0
        %v1231 = vadd.f32 %v280, %v1230
        %v1232 = vpop.f32.mrb[0].mxu0
        %v1233 = vadd.f32 %v284, %v1232
        %v1234 = vpop.f32.mrb[0].mxu0
        %v1235 = vadd.f32 %v280, %v1234
        %v1236 = vpop.f32.mrb[0].mxu0
        %v1237 = vadd.f32 %v284, %v1236
        %1238 = vdwg.mxu0
        %v1239 = vpack.c.bf16 %v502, %v502
        %v1240 = vpack.c.bf16 %v504, %v504
        %v1241 = vpack.c.bf16 %v695, %v695
        %v1242 = vpack.c.bf16 %v697, %v697
        %v1243 = vpack.c.bf16 %v888, %v888
        %v1244 = vpack.c.bf16 %v890, %v890
        %v1245 = vpack.c.bf16 %v1081, %v1081
        %v1246 = vpack.c.bf16 %v1083, %v1083
        %v1247 = vpack.c.bf16 %v506, %v506
        %v1248 = vpack.c.bf16 %v508, %v508
        %v1249 = vpack.c.bf16 %v699, %v699
        %v1250 = vpack.c.bf16 %v701, %v701
        %v1251 = vpack.c.bf16 %v892, %v892
        %v1252 = vpack.c.bf16 %v894, %v894
        %v1253 = vpack.c.bf16 %v1085, %v1085
        %v1254 = vpack.c.bf16 %v1087, %v1087
        %v1255 = vpack.c.bf16 %v512, %v512
        %v1256 = vpack.c.bf16 %v514, %v514
        %v1257 = vpack.c.bf16 %v705, %v705
        %v1258 = vpack.c.bf16 %v707, %v707
        %v1259 = vpack.c.bf16 %v898, %v898
        %v1260 = vpack.c.bf16 %v900, %v900
        %v1261 = vpack.c.bf16 %v1091, %v1091
        %v1262 = vpack.c.bf16 %v1093, %v1093
        %v1263 = vpack.c.bf16 %v516, %v516
        %v1264 = vpack.c.bf16 %v518, %v518
        %v1265 = vpack.c.bf16 %v709, %v709
        %v1266 = vpack.c.bf16 %v711, %v711
        %v1267 = vpack.c.bf16 %v902, %v902
        %v1268 = vpack.c.bf16 %v904, %v904
        %v1269 = vpack.c.bf16 %v1095, %v1095
        %v1270 = vpack.c.bf16 %v1097, %v1097
        %v1271 = vpack.c.bf16 %v522, %v522
        %v1272 = vpack.c.bf16 %v524, %v524
        %v1273 = vpack.c.bf16 %v715, %v715
        %v1274 = vpack.c.bf16 %v717, %v717
        %v1275 = vpack.c.bf16 %v908, %v908
        %v1276 = vpack.c.bf16 %v910, %v910
        %v1277 = vpack.c.bf16 %v1101, %v1101
        %v1278 = vpack.c.bf16 %v1103, %v1103
        %v1279 = vpack.c.bf16 %v526, %v526
        %v1280 = vpack.c.bf16 %v528, %v528
        %v1281 = vpack.c.bf16 %v719, %v719
        %v1282 = vpack.c.bf16 %v721, %v721
        %v1283 = vpack.c.bf16 %v912, %v912
        %v1284 = vpack.c.bf16 %v914, %v914
        %v1285 = vpack.c.bf16 %v1105, %v1105
        %v1286 = vpack.c.bf16 %v1107, %v1107
        %v1287 = vpack.c.bf16 %v532, %v532
        %v1288 = vpack.c.bf16 %v534, %v534
        %v1289 = vpack.c.bf16 %v725, %v725
        %v1290 = vpack.c.bf16 %v727, %v727
        %v1291 = vpack.c.bf16 %v918, %v918
        %v1292 = vpack.c.bf16 %v920, %v920
        %v1293 = vpack.c.bf16 %v1111, %v1111
        %v1294 = vpack.c.bf16 %v1113, %v1113
        %v1295 = vpack.c.bf16 %v536, %v536
        %v1296 = vpack.c.bf16 %v538, %v538
        %v1297 = vpack.c.bf16 %v729, %v729
        %v1298 = vpack.c.bf16 %v731, %v731
        %v1299 = vpack.c.bf16 %v922, %v922
        %v1300 = vpack.c.bf16 %v924, %v924
        %v1301 = vpack.c.bf16 %v1115, %v1115
        %v1302 = vpack.c.bf16 %v1117, %v1117
        %v1303 = vpack.c.bf16 %v542, %v542
        %v1304 = vpack.c.bf16 %v544, %v544
        %v1305 = vpack.c.bf16 %v735, %v735
        %v1306 = vpack.c.bf16 %v737, %v737
        %v1307 = vpack.c.bf16 %v928, %v928
        %v1308 = vpack.c.bf16 %v930, %v930
        %v1309 = vpack.c.bf16 %v1121, %v1121
        %v1310 = vpack.c.bf16 %v1123, %v1123
        %v1311 = vpack.c.bf16 %v546, %v546
        %v1312 = vpack.c.bf16 %v548, %v548
        %v1313 = vpack.c.bf16 %v739, %v739
        %v1314 = vpack.c.bf16 %v741, %v741
        %v1315 = vpack.c.bf16 %v932, %v932
        %v1316 = vpack.c.bf16 %v934, %v934
        %v1317 = vpack.c.bf16 %v1125, %v1125
        %v1318 = vpack.c.bf16 %v1127, %v1127
        %v1319 = vpack.c.bf16 %v552, %v552
        %v1320 = vpack.c.bf16 %v554, %v554
        %v1321 = vpack.c.bf16 %v745, %v745
        %v1322 = vpack.c.bf16 %v747, %v747
        %v1323 = vpack.c.bf16 %v938, %v938
        %v1324 = vpack.c.bf16 %v940, %v940
        %v1325 = vpack.c.bf16 %v1131, %v1131
        %v1326 = vpack.c.bf16 %v1133, %v1133
        %v1327 = vpack.c.bf16 %v556, %v556
        %v1328 = vpack.c.bf16 %v558, %v558
        %v1329 = vpack.c.bf16 %v749, %v749
        %v1330 = vpack.c.bf16 %v751, %v751
        %v1331 = vpack.c.bf16 %v942, %v942
        %v1332 = vpack.c.bf16 %v944, %v944
        %v1333 = vpack.c.bf16 %v1135, %v1135
        %v1334 = vpack.c.bf16 %v1137, %v1137
        %v1335 = vpack.c.bf16 %v562, %v562
        %v1336 = vpack.c.bf16 %v564, %v564
        %v1337 = vpack.c.bf16 %v755, %v755
        %v1338 = vpack.c.bf16 %v757, %v757
        %v1339 = vpack.c.bf16 %v948, %v948
        %v1340 = vpack.c.bf16 %v950, %v950
        %v1341 = vpack.c.bf16 %v1141, %v1141
        %v1342 = vpack.c.bf16 %v1143, %v1143
        %v1343 = vpack.c.bf16 %v566, %v566
        %v1344 = vpack.c.bf16 %v568, %v568
        %v1345 = vpack.c.bf16 %v759, %v759
        %v1346 = vpack.c.bf16 %v761, %v761
        %v1347 = vpack.c.bf16 %v952, %v952
        %v1348 = vpack.c.bf16 %v954, %v954
        %v1349 = vpack.c.bf16 %v1145, %v1145
        %v1350 = vpack.c.bf16 %v1147, %v1147
        %v1351 = vpack.c.bf16 %v572, %v572
        %v1352 = vpack.c.bf16 %v574, %v574
        %v1353 = vpack.c.bf16 %v765, %v765
        %v1354 = vpack.c.bf16 %v767, %v767
        %v1355 = vpack.c.bf16 %v958, %v958
        %v1356 = vpack.c.bf16 %v960, %v960
        %v1357 = vpack.c.bf16 %v1151, %v1151
        %v1358 = vpack.c.bf16 %v1153, %v1153
        %v1359 = vpack.c.bf16 %v576, %v576
        %v1360 = vpack.c.bf16 %v578, %v578
        %v1361 = vpack.c.bf16 %v769, %v769
        %v1362 = vpack.c.bf16 %v771, %v771
        %v1363 = vpack.c.bf16 %v962, %v962
        %v1364 = vpack.c.bf16 %v964, %v964
        %v1365 = vpack.c.bf16 %v1155, %v1155
        %v1366 = vpack.c.bf16 %v1157, %v1157
        %v1367 = vpack.c.bf16 %v582, %v582
        %v1368 = vpack.c.bf16 %v584, %v584
        %v1369 = vpack.c.bf16 %v775, %v775
        %v1370 = vpack.c.bf16 %v777, %v777
        %v1371 = vpack.c.bf16 %v968, %v968
        %v1372 = vpack.c.bf16 %v970, %v970
        %v1373 = vpack.c.bf16 %v1161, %v1161
        %v1374 = vpack.c.bf16 %v1163, %v1163
        %v1375 = vpack.c.bf16 %v586, %v586
        %v1376 = vpack.c.bf16 %v588, %v588
        %v1377 = vpack.c.bf16 %v779, %v779
        %v1378 = vpack.c.bf16 %v781, %v781
        %v1379 = vpack.c.bf16 %v972, %v972
        %v1380 = vpack.c.bf16 %v974, %v974
        %v1381 = vpack.c.bf16 %v1165, %v1165
        %v1382 = vpack.c.bf16 %v1167, %v1167
        %v1383 = vpack.c.bf16 %v592, %v592
        %v1384 = vpack.c.bf16 %v594, %v594
        %v1385 = vpack.c.bf16 %v785, %v785
        %v1386 = vpack.c.bf16 %v787, %v787
        %v1387 = vpack.c.bf16 %v978, %v978
        %v1388 = vpack.c.bf16 %v980, %v980
        %v1389 = vpack.c.bf16 %v1171, %v1171
        %v1390 = vpack.c.bf16 %v1173, %v1173
        %v1391 = vpack.c.bf16 %v596, %v596
        %v1392 = vpack.c.bf16 %v598, %v598
        %v1393 = vpack.c.bf16 %v789, %v789
        %v1394 = vpack.c.bf16 %v791, %v791
        %v1395 = vpack.c.bf16 %v982, %v982
        %v1396 = vpack.c.bf16 %v984, %v984
        %v1397 = vpack.c.bf16 %v1175, %v1175
        %v1398 = vpack.c.bf16 %v1177, %v1177
        %v1399 = vpack.c.bf16 %v602, %v602
        %v1400 = vpack.c.bf16 %v604, %v604
        %v1401 = vpack.c.bf16 %v795, %v795
        %v1402 = vpack.c.bf16 %v797, %v797
        %v1403 = vpack.c.bf16 %v988, %v988
        %v1404 = vpack.c.bf16 %v990, %v990
        %v1405 = vpack.c.bf16 %v1181, %v1181
        %v1406 = vpack.c.bf16 %v1183, %v1183
        %v1407 = vpack.c.bf16 %v606, %v606
        %v1408 = vpack.c.bf16 %v608, %v608
        %v1409 = vpack.c.bf16 %v799, %v799
        %v1410 = vpack.c.bf16 %v801, %v801
        %v1411 = vpack.c.bf16 %v992, %v992
        %v1412 = vpack.c.bf16 %v994, %v994
        %v1413 = vpack.c.bf16 %v1185, %v1185
        %v1414 = vpack.c.bf16 %v1187, %v1187
        %v1415 = vpack.c.bf16 %v612, %v612
        %v1416 = vpack.c.bf16 %v614, %v614
        %v1417 = vpack.c.bf16 %v805, %v805
        %v1418 = vpack.c.bf16 %v807, %v807
        %v1419 = vpack.c.bf16 %v998, %v998
        %v1420 = vpack.c.bf16 %v1000, %v1000
        %v1421 = vpack.c.bf16 %v1191, %v1191
        %v1422 = vpack.c.bf16 %v1193, %v1193
        %v1423 = vpack.c.bf16 %v616, %v616
        %v1424 = vpack.c.bf16 %v618, %v618
        %v1425 = vpack.c.bf16 %v809, %v809
        %v1426 = vpack.c.bf16 %v811, %v811
        %v1427 = vpack.c.bf16 %v1002, %v1002
        %v1428 = vpack.c.bf16 %v1004, %v1004
        %v1429 = vpack.c.bf16 %v1195, %v1195
        %v1430 = vpack.c.bf16 %v1197, %v1197
        %v1431 = vpack.c.bf16 %v622, %v622
        %v1432 = vpack.c.bf16 %v624, %v624
        %v1433 = vpack.c.bf16 %v815, %v815
        %v1434 = vpack.c.bf16 %v817, %v817
        %v1435 = vpack.c.bf16 %v1008, %v1008
        %v1436 = vpack.c.bf16 %v1010, %v1010
        %v1437 = vpack.c.bf16 %v1201, %v1201
        %v1438 = vpack.c.bf16 %v1203, %v1203
        %v1439 = vpack.c.bf16 %v626, %v626
        %v1440 = vpack.c.bf16 %v628, %v628
        %v1441 = vpack.c.bf16 %v819, %v819
        %v1442 = vpack.c.bf16 %v821, %v821
        %v1443 = vpack.c.bf16 %v1012, %v1012
        %v1444 = vpack.c.bf16 %v1014, %v1014
        %v1445 = vpack.c.bf16 %v1205, %v1205
        %v1446 = vpack.c.bf16 %v1207, %v1207
        %v1447 = vpack.c.bf16 %v632, %v632
        %v1448 = vpack.c.bf16 %v634, %v634
        %v1449 = vpack.c.bf16 %v825, %v825
        %v1450 = vpack.c.bf16 %v827, %v827
        %v1451 = vpack.c.bf16 %v1018, %v1018
        %v1452 = vpack.c.bf16 %v1020, %v1020
        %v1453 = vpack.c.bf16 %v1211, %v1211
        %v1454 = vpack.c.bf16 %v1213, %v1213
        %v1455 = vpack.c.bf16 %v636, %v636
        %v1456 = vpack.c.bf16 %v638, %v638
        %v1457 = vpack.c.bf16 %v829, %v829
        %v1458 = vpack.c.bf16 %v831, %v831
        %v1459 = vpack.c.bf16 %v1022, %v1022
        %v1460 = vpack.c.bf16 %v1024, %v1024
        %v1461 = vpack.c.bf16 %v1215, %v1215
        %v1462 = vpack.c.bf16 %v1217, %v1217
        %v1463 = vpack.c.bf16 %v642, %v642
        %v1464 = vpack.c.bf16 %v644, %v644
        %v1465 = vpack.c.bf16 %v835, %v835
        %v1466 = vpack.c.bf16 %v837, %v837
        %v1467 = vpack.c.bf16 %v1028, %v1028
        %v1468 = vpack.c.bf16 %v1030, %v1030
        %v1469 = vpack.c.bf16 %v1221, %v1221
        %v1470 = vpack.c.bf16 %v1223, %v1223
        %v1471 = vpack.c.bf16 %v646, %v646
        %v1472 = vpack.c.bf16 %v648, %v648
        %v1473 = vpack.c.bf16 %v839, %v839
        %v1474 = vpack.c.bf16 %v841, %v841
        %v1475 = vpack.c.bf16 %v1032, %v1032
        %v1476 = vpack.c.bf16 %v1034, %v1034
        %v1477 = vpack.c.bf16 %v1225, %v1225
        %v1478 = vpack.c.bf16 %v1227, %v1227
        %v1479 = vpack.c.bf16 %v652, %v652
        %v1480 = vpack.c.bf16 %v654, %v654
        %v1481 = vpack.c.bf16 %v845, %v845
        %v1482 = vpack.c.bf16 %v847, %v847
        %v1483 = vpack.c.bf16 %v1038, %v1038
        %v1484 = vpack.c.bf16 %v1040, %v1040
        %v1485 = vpack.c.bf16 %v1231, %v1231
        %v1486 = vpack.c.bf16 %v1233, %v1233
        %v1487 = vpack.c.bf16 %v656, %v656
        %v1488 = vpack.c.bf16 %v658, %v658
        %v1489 = vpack.c.bf16 %v849, %v849
        %v1490 = vpack.c.bf16 %v851, %v851
        %v1491 = vpack.c.bf16 %v1042, %v1042
        %v1492 = vpack.c.bf16 %v1044, %v1044
        %v1493 = vpack.c.bf16 %v1235, %v1235
        %v1494 = vpack.c.bf16 %v1237, %v1237
        %v1751 = vunpack.c.l.b16 %v1239
        %v1752 = vunpack.c.l.b16 %v1240
        %v1753 = vunpack.c.l.b16 %v1241
        %v1754 = vunpack.c.l.b16 %v1242
        %v1755 = vunpack.c.l.b16 %v1243
        %v1756 = vunpack.c.l.b16 %v1244
        %v1757 = vunpack.c.l.b16 %v1245
        %v1758 = vunpack.c.l.b16 %v1246
        %v1759 = vunpack.c.l.b16 %v1247
        %v1760 = vunpack.c.l.b16 %v1248
        %v1761 = vunpack.c.l.b16 %v1249
        %v1762 = vunpack.c.l.b16 %v1250
        %v1763 = vunpack.c.l.b16 %v1251
        %v1764 = vunpack.c.l.b16 %v1252
        %v1765 = vunpack.c.l.b16 %v1253
        %v1766 = vunpack.c.l.b16 %v1254
        %v1767 = vunpack.c.l.b16 %v1255
        %v1768 = vunpack.c.l.b16 %v1256
        %v1769 = vunpack.c.l.b16 %v1257
        %v1770 = vunpack.c.l.b16 %v1258
        %v1771 = vunpack.c.l.b16 %v1259
        %v1772 = vunpack.c.l.b16 %v1260
        %v1773 = vunpack.c.l.b16 %v1261
        %v1774 = vunpack.c.l.b16 %v1262
        %v1775 = vunpack.c.l.b16 %v1263
        %v1776 = vunpack.c.l.b16 %v1264
        %v1777 = vunpack.c.l.b16 %v1265
        %v1778 = vunpack.c.l.b16 %v1266
        %v1779 = vunpack.c.l.b16 %v1267
        %v1780 = vunpack.c.l.b16 %v1268
        %v1781 = vunpack.c.l.b16 %v1269
        %v1782 = vunpack.c.l.b16 %v1270
        %v1783 = vunpack.c.l.b16 %v1271
        %v1784 = vunpack.c.l.b16 %v1272
        %v1785 = vunpack.c.l.b16 %v1273
        %v1786 = vunpack.c.l.b16 %v1274
        %v1787 = vunpack.c.l.b16 %v1275
        %v1788 = vunpack.c.l.b16 %v1276
        %v1789 = vunpack.c.l.b16 %v1277
        %v1790 = vunpack.c.l.b16 %v1278
        %v1791 = vunpack.c.l.b16 %v1279
        %v1792 = vunpack.c.l.b16 %v1280
        %v1793 = vunpack.c.l.b16 %v1281
        %v1794 = vunpack.c.l.b16 %v1282
        %v1795 = vunpack.c.l.b16 %v1283
        %v1796 = vunpack.c.l.b16 %v1284
        %v1797 = vunpack.c.l.b16 %v1285
        %v1798 = vunpack.c.l.b16 %v1286
        %v1799 = vunpack.c.l.b16 %v1287
        %v1800 = vunpack.c.l.b16 %v1288
        %v1801 = vunpack.c.l.b16 %v1289
        %v1802 = vunpack.c.l.b16 %v1290
        %v1803 = vunpack.c.l.b16 %v1291
        %v1804 = vunpack.c.l.b16 %v1292
        %v1805 = vunpack.c.l.b16 %v1293
        %v1806 = vunpack.c.l.b16 %v1294
        %v1807 = vunpack.c.l.b16 %v1295
        %v1808 = vunpack.c.l.b16 %v1296
        %v1809 = vunpack.c.l.b16 %v1297
        %v1810 = vunpack.c.l.b16 %v1298
        %v1811 = vunpack.c.l.b16 %v1299
        %v1812 = vunpack.c.l.b16 %v1300
        %v1813 = vunpack.c.l.b16 %v1301
        %v1814 = vunpack.c.l.b16 %v1302
        %v1815 = vunpack.c.l.b16 %v1303
        %v1816 = vunpack.c.l.b16 %v1304
        %v1817 = vunpack.c.l.b16 %v1305
        %v1818 = vunpack.c.l.b16 %v1306
        %v1819 = vunpack.c.l.b16 %v1307
        %v1820 = vunpack.c.l.b16 %v1308
        %v1821 = vunpack.c.l.b16 %v1309
        %v1822 = vunpack.c.l.b16 %v1310
        %v1823 = vunpack.c.l.b16 %v1311
        %v1824 = vunpack.c.l.b16 %v1312
        %v1825 = vunpack.c.l.b16 %v1313
        %v1826 = vunpack.c.l.b16 %v1314
        %v1827 = vunpack.c.l.b16 %v1315
        %v1828 = vunpack.c.l.b16 %v1316
        %v1829 = vunpack.c.l.b16 %v1317
        %v1830 = vunpack.c.l.b16 %v1318
        %v1831 = vunpack.c.l.b16 %v1319
        %v1832 = vunpack.c.l.b16 %v1320
        %v1833 = vunpack.c.l.b16 %v1321
        %v1834 = vunpack.c.l.b16 %v1322
        %v1835 = vunpack.c.l.b16 %v1323
        %v1836 = vunpack.c.l.b16 %v1324
        %v1837 = vunpack.c.l.b16 %v1325
        %v1838 = vunpack.c.l.b16 %v1326
        %v1839 = vunpack.c.l.b16 %v1327
        %v1840 = vunpack.c.l.b16 %v1328
        %v1841 = vunpack.c.l.b16 %v1329
        %v1842 = vunpack.c.l.b16 %v1330
        %v1843 = vunpack.c.l.b16 %v1331
        %v1844 = vunpack.c.l.b16 %v1332
        %v1845 = vunpack.c.l.b16 %v1333
        %v1846 = vunpack.c.l.b16 %v1334
        %v1847 = vunpack.c.l.b16 %v1335
        %v1848 = vunpack.c.l.b16 %v1336
        %v1849 = vunpack.c.l.b16 %v1337
        %v1850 = vunpack.c.l.b16 %v1338
        %v1851 = vunpack.c.l.b16 %v1339
        %v1852 = vunpack.c.l.b16 %v1340
        %v1853 = vunpack.c.l.b16 %v1341
        %v1854 = vunpack.c.l.b16 %v1342
        %v1855 = vunpack.c.l.b16 %v1343
        %v1856 = vunpack.c.l.b16 %v1344
        %v1857 = vunpack.c.l.b16 %v1345
        %v1858 = vunpack.c.l.b16 %v1346
        %v1859 = vunpack.c.l.b16 %v1347
        %v1860 = vunpack.c.l.b16 %v1348
        %v1861 = vunpack.c.l.b16 %v1349
        %v1862 = vunpack.c.l.b16 %v1350
        %v1863 = vunpack.c.l.b16 %v1351
        %v1864 = vunpack.c.l.b16 %v1352
        %v1865 = vunpack.c.l.b16 %v1353
        %v1866 = vunpack.c.l.b16 %v1354
        %v1867 = vunpack.c.l.b16 %v1355
        %v1868 = vunpack.c.l.b16 %v1356
        %v1869 = vunpack.c.l.b16 %v1357
        %v1870 = vunpack.c.l.b16 %v1358
        %v1871 = vunpack.c.l.b16 %v1359
        %v1872 = vunpack.c.l.b16 %v1360
        %v1873 = vunpack.c.l.b16 %v1361
        %v1874 = vunpack.c.l.b16 %v1362
        %v1875 = vunpack.c.l.b16 %v1363
        %v1876 = vunpack.c.l.b16 %v1364
        %v1877 = vunpack.c.l.b16 %v1365
        %v1878 = vunpack.c.l.b16 %v1366
        %v1879 = vunpack.c.l.b16 %v1367
        %v1880 = vunpack.c.l.b16 %v1368
        %v1881 = vunpack.c.l.b16 %v1369
        %v1882 = vunpack.c.l.b16 %v1370
        %v1883 = vunpack.c.l.b16 %v1371
        %v1884 = vunpack.c.l.b16 %v1372
        %v1885 = vunpack.c.l.b16 %v1373
        %v1886 = vunpack.c.l.b16 %v1374
        %v1887 = vunpack.c.l.b16 %v1375
        %v1888 = vunpack.c.l.b16 %v1376
        %v1889 = vunpack.c.l.b16 %v1377
        %v1890 = vunpack.c.l.b16 %v1378
        %v1891 = vunpack.c.l.b16 %v1379
        %v1892 = vunpack.c.l.b16 %v1380
        %v1893 = vunpack.c.l.b16 %v1381
        %v1894 = vunpack.c.l.b16 %v1382
        %v1895 = vunpack.c.l.b16 %v1383
        %v1896 = vunpack.c.l.b16 %v1384
        %v1897 = vunpack.c.l.b16 %v1385
        %v1898 = vunpack.c.l.b16 %v1386
        %v1899 = vunpack.c.l.b16 %v1387
        %v1900 = vunpack.c.l.b16 %v1388
        %v1901 = vunpack.c.l.b16 %v1389
        %v1902 = vunpack.c.l.b16 %v1390
        %v1903 = vunpack.c.l.b16 %v1391
        %v1904 = vunpack.c.l.b16 %v1392
        %v1905 = vunpack.c.l.b16 %v1393
        %v1906 = vunpack.c.l.b16 %v1394
        %v1907 = vunpack.c.l.b16 %v1395
        %v1908 = vunpack.c.l.b16 %v1396
        %v1909 = vunpack.c.l.b16 %v1397
        %v1910 = vunpack.c.l.b16 %v1398
        %v1911 = vunpack.c.l.b16 %v1399
        %v1912 = vunpack.c.l.b16 %v1400
        %v1913 = vunpack.c.l.b16 %v1401
        %v1914 = vunpack.c.l.b16 %v1402
        %v1915 = vunpack.c.l.b16 %v1403
        %v1916 = vunpack.c.l.b16 %v1404
        %v1917 = vunpack.c.l.b16 %v1405
        %v1918 = vunpack.c.l.b16 %v1406
        %v1919 = vunpack.c.l.b16 %v1407
        %v1920 = vunpack.c.l.b16 %v1408
        %v1921 = vunpack.c.l.b16 %v1409
        %v1922 = vunpack.c.l.b16 %v1410
        %v1923 = vunpack.c.l.b16 %v1411
        %v1924 = vunpack.c.l.b16 %v1412
        %v1925 = vunpack.c.l.b16 %v1413
        %v1926 = vunpack.c.l.b16 %v1414
        %v1927 = vunpack.c.l.b16 %v1415
        %v1928 = vunpack.c.l.b16 %v1416
        %v1929 = vunpack.c.l.b16 %v1417
        %v1930 = vunpack.c.l.b16 %v1418
        %v1931 = vunpack.c.l.b16 %v1419
        %v1932 = vunpack.c.l.b16 %v1420
        %v1933 = vunpack.c.l.b16 %v1421
        %v1934 = vunpack.c.l.b16 %v1422
        %v1935 = vunpack.c.l.b16 %v1423
        %v1936 = vunpack.c.l.b16 %v1424
        %v1937 = vunpack.c.l.b16 %v1425
        %v1938 = vunpack.c.l.b16 %v1426
        %v1939 = vunpack.c.l.b16 %v1427
        %v1940 = vunpack.c.l.b16 %v1428
        %v1941 = vunpack.c.l.b16 %v1429
        %v1942 = vunpack.c.l.b16 %v1430
        %v1943 = vunpack.c.l.b16 %v1431
        %v1944 = vunpack.c.l.b16 %v1432
        %v1945 = vunpack.c.l.b16 %v1433
        %v1946 = vunpack.c.l.b16 %v1434
        %v1947 = vunpack.c.l.b16 %v1435
        %v1948 = vunpack.c.l.b16 %v1436
        %v1949 = vunpack.c.l.b16 %v1437
        %v1950 = vunpack.c.l.b16 %v1438
        %v1951 = vunpack.c.l.b16 %v1439
        %v1952 = vunpack.c.l.b16 %v1440
        %v1953 = vunpack.c.l.b16 %v1441
        %v1954 = vunpack.c.l.b16 %v1442
        %v1955 = vunpack.c.l.b16 %v1443
        %v1956 = vunpack.c.l.b16 %v1444
        %v1957 = vunpack.c.l.b16 %v1445
        %v1958 = vunpack.c.l.b16 %v1446
        %v1959 = vunpack.c.l.b16 %v1447
        %v1960 = vunpack.c.l.b16 %v1448
        %v1961 = vunpack.c.l.b16 %v1449
        %v1962 = vunpack.c.l.b16 %v1450
        %v1963 = vunpack.c.l.b16 %v1451
        %v1964 = vunpack.c.l.b16 %v1452
        %v1965 = vunpack.c.l.b16 %v1453
        %v1966 = vunpack.c.l.b16 %v1454
        %v1967 = vunpack.c.l.b16 %v1455
        %v1968 = vunpack.c.l.b16 %v1456
        %v1969 = vunpack.c.l.b16 %v1457
        %v1970 = vunpack.c.l.b16 %v1458
        %v1971 = vunpack.c.l.b16 %v1459
        %v1972 = vunpack.c.l.b16 %v1460
        %v1973 = vunpack.c.l.b16 %v1461
        %v1974 = vunpack.c.l.b16 %v1462
        %v1975 = vunpack.c.l.b16 %v1463
        %v1976 = vunpack.c.l.b16 %v1464
        %v1977 = vunpack.c.l.b16 %v1465
        %v1978 = vunpack.c.l.b16 %v1466
        %v1979 = vunpack.c.l.b16 %v1467
        %v1980 = vunpack.c.l.b16 %v1468
        %v1981 = vunpack.c.l.b16 %v1469
        %v1982 = vunpack.c.l.b16 %v1470
        %v1983 = vunpack.c.l.b16 %v1471
        %v1984 = vunpack.c.l.b16 %v1472
        %v1985 = vunpack.c.l.b16 %v1473
        %v1986 = vunpack.c.l.b16 %v1474
        %v1987 = vunpack.c.l.b16 %v1475
        %v1988 = vunpack.c.l.b16 %v1476
        %v1989 = vunpack.c.l.b16 %v1477
        %v1990 = vunpack.c.l.b16 %v1478
        %v1991 = vunpack.c.l.b16 %v1479
        %v1992 = vunpack.c.l.b16 %v1480
        %v1993 = vunpack.c.l.b16 %v1481
        %v1994 = vunpack.c.l.b16 %v1482
        %v1995 = vunpack.c.l.b16 %v1483
        %v1996 = vunpack.c.l.b16 %v1484
        %v1997 = vunpack.c.l.b16 %v1485
        %v1998 = vunpack.c.l.b16 %v1486
        %v1999 = vunpack.c.l.b16 %v1487
        %v2000 = vunpack.c.l.b16 %v1488
        %v2001 = vunpack.c.l.b16 %v1489
        %v2002 = vunpack.c.l.b16 %v1490
        %v2003 = vunpack.c.l.b16 %v1491
        %v2004 = vunpack.c.l.b16 %v1492
        %v2005 = vunpack.c.l.b16 %v1493
        %v2006 = vunpack.c.l.b16 %v1494
        %v2007 = vpack.c.b16 %v1752, %v1751
        %v2008 = vpack.c.b16 %v1754, %v1753
        %v2009 = vpack.c.b16 %v1756, %v1755
        %v2010 = vpack.c.b16 %v1758, %v1757
        %v2011 = vpack.c.b16 %v1760, %v1759
        %v2012 = vpack.c.b16 %v1762, %v1761
        %v2013 = vpack.c.b16 %v1764, %v1763
        %v2014 = vpack.c.b16 %v1766, %v1765
        %v2015 = vpack.c.b16 %v1768, %v1767
        %v2016 = vpack.c.b16 %v1770, %v1769
        %v2017 = vpack.c.b16 %v1772, %v1771
        %v2018 = vpack.c.b16 %v1774, %v1773
        %v2019 = vpack.c.b16 %v1776, %v1775
        %v2020 = vpack.c.b16 %v1778, %v1777
        %v2021 = vpack.c.b16 %v1780, %v1779
        %v2022 = vpack.c.b16 %v1782, %v1781
        %v2023 = vpack.c.b16 %v1784, %v1783
        %v2024 = vpack.c.b16 %v1786, %v1785
        %v2025 = vpack.c.b16 %v1788, %v1787
        %v2026 = vpack.c.b16 %v1790, %v1789
        %v2027 = vpack.c.b16 %v1792, %v1791
        %v2028 = vpack.c.b16 %v1794, %v1793
        %v2029 = vpack.c.b16 %v1796, %v1795
        %v2030 = vpack.c.b16 %v1798, %v1797
        %v2031 = vpack.c.b16 %v1800, %v1799
        %v2032 = vpack.c.b16 %v1802, %v1801
        %v2033 = vpack.c.b16 %v1804, %v1803
        %v2034 = vpack.c.b16 %v1806, %v1805
        %v2035 = vpack.c.b16 %v1808, %v1807
        %v2036 = vpack.c.b16 %v1810, %v1809
        %v2037 = vpack.c.b16 %v1812, %v1811
        %v2038 = vpack.c.b16 %v1814, %v1813
        %v2039 = vpack.c.b16 %v1816, %v1815
        %v2040 = vpack.c.b16 %v1818, %v1817
        %v2041 = vpack.c.b16 %v1820, %v1819
        %v2042 = vpack.c.b16 %v1822, %v1821
        %v2043 = vpack.c.b16 %v1824, %v1823
        %v2044 = vpack.c.b16 %v1826, %v1825
        %v2045 = vpack.c.b16 %v1828, %v1827
        %v2046 = vpack.c.b16 %v1830, %v1829
        %v2047 = vpack.c.b16 %v1832, %v1831
        %v2048 = vpack.c.b16 %v1834, %v1833
        %v2049 = vpack.c.b16 %v1836, %v1835
        %v2050 = vpack.c.b16 %v1838, %v1837
        %v2051 = vpack.c.b16 %v1840, %v1839
        %v2052 = vpack.c.b16 %v1842, %v1841
        %v2053 = vpack.c.b16 %v1844, %v1843
        %v2054 = vpack.c.b16 %v1846, %v1845
        %v2055 = vpack.c.b16 %v1848, %v1847
        %v2056 = vpack.c.b16 %v1850, %v1849
        %v2057 = vpack.c.b16 %v1852, %v1851
        %v2058 = vpack.c.b16 %v1854, %v1853
        %v2059 = vpack.c.b16 %v1856, %v1855
        %v2060 = vpack.c.b16 %v1858, %v1857
        %v2061 = vpack.c.b16 %v1860, %v1859
        %v2062 = vpack.c.b16 %v1862, %v1861
        %v2063 = vpack.c.b16 %v1864, %v1863
        %v2064 = vpack.c.b16 %v1866, %v1865
        %v2065 = vpack.c.b16 %v1868, %v1867
        %v2066 = vpack.c.b16 %v1870, %v1869
        %v2067 = vpack.c.b16 %v1872, %v1871
        %v2068 = vpack.c.b16 %v1874, %v1873
        %v2069 = vpack.c.b16 %v1876, %v1875
        %v2070 = vpack.c.b16 %v1878, %v1877
        %v2071 = vpack.c.b16 %v1880, %v1879
        %v2072 = vpack.c.b16 %v1882, %v1881
        %v2073 = vpack.c.b16 %v1884, %v1883
        %v2074 = vpack.c.b16 %v1886, %v1885
        %v2075 = vpack.c.b16 %v1888, %v1887
        %v2076 = vpack.c.b16 %v1890, %v1889
        %v2077 = vpack.c.b16 %v1892, %v1891
        %v2078 = vpack.c.b16 %v1894, %v1893
        %v2079 = vpack.c.b16 %v1896, %v1895
        %v2080 = vpack.c.b16 %v1898, %v1897
        %v2081 = vpack.c.b16 %v1900, %v1899
        %v2082 = vpack.c.b16 %v1902, %v1901
        %v2083 = vpack.c.b16 %v1904, %v1903
        %v2084 = vpack.c.b16 %v1906, %v1905
        %v2085 = vpack.c.b16 %v1908, %v1907
        %v2086 = vpack.c.b16 %v1910, %v1909
        %v2087 = vpack.c.b16 %v1912, %v1911
        %v2088 = vpack.c.b16 %v1914, %v1913
        %v2089 = vpack.c.b16 %v1916, %v1915
        %v2090 = vpack.c.b16 %v1918, %v1917
        %v2091 = vpack.c.b16 %v1920, %v1919
        %v2092 = vpack.c.b16 %v1922, %v1921
        %v2093 = vpack.c.b16 %v1924, %v1923
        %v2094 = vpack.c.b16 %v1926, %v1925
        %v2095 = vpack.c.b16 %v1928, %v1927
        %v2096 = vpack.c.b16 %v1930, %v1929
        %v2097 = vpack.c.b16 %v1932, %v1931
        %v2098 = vpack.c.b16 %v1934, %v1933
        %v2099 = vpack.c.b16 %v1936, %v1935
        %v2100 = vpack.c.b16 %v1938, %v1937
        %v2101 = vpack.c.b16 %v1940, %v1939
        %v2102 = vpack.c.b16 %v1942, %v1941
        %v2103 = vpack.c.b16 %v1944, %v1943
        %v2104 = vpack.c.b16 %v1946, %v1945
        %v2105 = vpack.c.b16 %v1948, %v1947
        %v2106 = vpack.c.b16 %v1950, %v1949
        %v2107 = vpack.c.b16 %v1952, %v1951
        %v2108 = vpack.c.b16 %v1954, %v1953
        %v2109 = vpack.c.b16 %v1956, %v1955
        %v2110 = vpack.c.b16 %v1958, %v1957
        %v2111 = vpack.c.b16 %v1960, %v1959
        %v2112 = vpack.c.b16 %v1962, %v1961
        %v2113 = vpack.c.b16 %v1964, %v1963
        %v2114 = vpack.c.b16 %v1966, %v1965
        %v2115 = vpack.c.b16 %v1968, %v1967
        %v2116 = vpack.c.b16 %v1970, %v1969
        %v2117 = vpack.c.b16 %v1972, %v1971
        %v2118 = vpack.c.b16 %v1974, %v1973
        %v2119 = vpack.c.b16 %v1976, %v1975
        %v2120 = vpack.c.b16 %v1978, %v1977
        %v2121 = vpack.c.b16 %v1980, %v1979
        %v2122 = vpack.c.b16 %v1982, %v1981
        %v2123 = vpack.c.b16 %v1984, %v1983
        %v2124 = vpack.c.b16 %v1986, %v1985
        %v2125 = vpack.c.b16 %v1988, %v1987
        %v2126 = vpack.c.b16 %v1990, %v1989
        %v2127 = vpack.c.b16 %v1992, %v1991
        %v2128 = vpack.c.b16 %v1994, %v1993
        %v2129 = vpack.c.b16 %v1996, %v1995
        %v2130 = vpack.c.b16 %v1998, %v1997
        %v2131 = vpack.c.b16 %v2000, %v1999
        %v2132 = vpack.c.b16 %v2002, %v2001
        %v2133 = vpack.c.b16 %v2004, %v2003
        %v2134 = vpack.c.b16 %v2006, %v2005
        %2263 = vst [vmem:[%s213] sm:$0xff] %v2007
        %2264 = vst [vmem:[%s213 + $0x8] sm:$0xff] %v2008
        %2265 = vst [vmem:[%s213 + $0x10] sm:$0xff] %v2009
        %2266 = vst [vmem:[%s213 + $0x18] sm:$0xff] %v2010
        %2267 = vst [vmem:[%s213 + $0x20] sm:$0xff] %v2011
        %2268 = vst [vmem:[%s213 + $0x28] sm:$0xff] %v2012
        %2269 = vst [vmem:[%s213 + $0x30] sm:$0xff] %v2013
        %2270 = vst [vmem:[%s213 + $0x38] sm:$0xff] %v2014
        %2271 = vst [vmem:[%s213 + $0x40] sm:$0xff] %v2015
        %2272 = vst [vmem:[%s213 + $0x48] sm:$0xff] %v2016
        %2273 = vst [vmem:[%s213 + $0x50] sm:$0xff] %v2017
        %2274 = vst [vmem:[%s213 + $0x58] sm:$0xff] %v2018
        %2275 = vst [vmem:[%s213 + $0x60] sm:$0xff] %v2019
        %2276 = vst [vmem:[%s213 + $0x68] sm:$0xff] %v2020
        %2277 = vst [vmem:[%s213 + $0x70] sm:$0xff] %v2021
        %2278 = vst [vmem:[%s213 + $0x78] sm:$0xff] %v2022
        %2279 = vst [vmem:[%s213 + $0x80] sm:$0xff] %v2023
        %2280 = vst [vmem:[%s213 + $0x88] sm:$0xff] %v2024
        %2281 = vst [vmem:[%s213 + $0x90] sm:$0xff] %v2025
        %2282 = vst [vmem:[%s213 + $0x98] sm:$0xff] %v2026
        %2283 = vst [vmem:[%s213 + $0xa0] sm:$0xff] %v2027
        %2284 = vst [vmem:[%s213 + $0xa8] sm:$0xff] %v2028
        %2285 = vst [vmem:[%s213 + $0xb0] sm:$0xff] %v2029
        %2286 = vst [vmem:[%s213 + $0xb8] sm:$0xff] %v2030
        %2287 = vst [vmem:[%s213 + $0xc0] sm:$0xff] %v2031
        %2288 = vst [vmem:[%s213 + $0xc8] sm:$0xff] %v2032
        %2289 = vst [vmem:[%s213 + $0xd0] sm:$0xff] %v2033
        %2290 = vst [vmem:[%s213 + $0xd8] sm:$0xff] %v2034
        %2291 = vst [vmem:[%s213 + $0xe0] sm:$0xff] %v2035
        %2292 = vst [vmem:[%s213 + $0xe8] sm:$0xff] %v2036
        %2293 = vst [vmem:[%s213 + $0xf0] sm:$0xff] %v2037
        %2294 = vst [vmem:[%s213 + $0xf8] sm:$0xff] %v2038
        %2295 = vst [vmem:[%s213 + $0x100] sm:$0xff] %v2039
        %2296 = vst [vmem:[%s213 + $0x108] sm:$0xff] %v2040
        %2297 = vst [vmem:[%s213 + $0x110] sm:$0xff] %v2041
        %2298 = vst [vmem:[%s213 + $0x118] sm:$0xff] %v2042
        %2299 = vst [vmem:[%s213 + $0x120] sm:$0xff] %v2043
        %2300 = vst [vmem:[%s213 + $0x128] sm:$0xff] %v2044
        %2301 = vst [vmem:[%s213 + $0x130] sm:$0xff] %v2045
        %2302 = vst [vmem:[%s213 + $0x138] sm:$0xff] %v2046
        %2303 = vst [vmem:[%s213 + $0x140] sm:$0xff] %v2047
        %2304 = vst [vmem:[%s213 + $0x148] sm:$0xff] %v2048
        %2305 = vst [vmem:[%s213 + $0x150] sm:$0xff] %v2049
        %2306 = vst [vmem:[%s213 + $0x158] sm:$0xff] %v2050
        %2307 = vst [vmem:[%s213 + $0x160] sm:$0xff] %v2051
        %2308 = vst [vmem:[%s213 + $0x168] sm:$0xff] %v2052
        %2309 = vst [vmem:[%s213 + $0x170] sm:$0xff] %v2053
        %2310 = vst [vmem:[%s213 + $0x178] sm:$0xff] %v2054
        %2311 = vst [vmem:[%s213 + $0x180] sm:$0xff] %v2055
        %2312 = vst [vmem:[%s213 + $0x188] sm:$0xff] %v2056
        %2313 = vst [vmem:[%s213 + $0x190] sm:$0xff] %v2057
        %2314 = vst [vmem:[%s213 + $0x198] sm:$0xff] %v2058
        %2315 = vst [vmem:[%s213 + $0x1a0] sm:$0xff] %v2059
        %2316 = vst [vmem:[%s213 + $0x1a8] sm:$0xff] %v2060
        %2317 = vst [vmem:[%s213 + $0x1b0] sm:$0xff] %v2061
        %2318 = vst [vmem:[%s213 + $0x1b8] sm:$0xff] %v2062
        %2319 = vst [vmem:[%s213 + $0x1c0] sm:$0xff] %v2063
        %2320 = vst [vmem:[%s213 + $0x1c8] sm:$0xff] %v2064
        %2321 = vst [vmem:[%s213 + $0x1d0] sm:$0xff] %v2065
        %2322 = vst [vmem:[%s213 + $0x1d8] sm:$0xff] %v2066
        %2323 = vst [vmem:[%s213 + $0x1e0] sm:$0xff] %v2067
        %2324 = vst [vmem:[%s213 + $0x1e8] sm:$0xff] %v2068
        %2325 = vst [vmem:[%s213 + $0x1f0] sm:$0xff] %v2069
        %2326 = vst [vmem:[%s213 + $0x1f8] sm:$0xff] %v2070
        %2327 = vst [vmem:[%s213 + $0x200] sm:$0xff] %v2071
        %2328 = vst [vmem:[%s213 + $0x208] sm:$0xff] %v2072
        %2329 = vst [vmem:[%s213 + $0x210] sm:$0xff] %v2073
        %2330 = vst [vmem:[%s213 + $0x218] sm:$0xff] %v2074
        %2331 = vst [vmem:[%s213 + $0x220] sm:$0xff] %v2075
        %2332 = vst [vmem:[%s213 + $0x228] sm:$0xff] %v2076
        %2333 = vst [vmem:[%s213 + $0x230] sm:$0xff] %v2077
        %2334 = vst [vmem:[%s213 + $0x238] sm:$0xff] %v2078
        %2335 = vst [vmem:[%s213 + $0x240] sm:$0xff] %v2079
        %2336 = vst [vmem:[%s213 + $0x248] sm:$0xff] %v2080
        %2337 = vst [vmem:[%s213 + $0x250] sm:$0xff] %v2081
        %2338 = vst [vmem:[%s213 + $0x258] sm:$0xff] %v2082
        %2339 = vst [vmem:[%s213 + $0x260] sm:$0xff] %v2083
        %2340 = vst [vmem:[%s213 + $0x268] sm:$0xff] %v2084
        %2341 = vst [vmem:[%s213 + $0x270] sm:$0xff] %v2085
        %2342 = vst [vmem:[%s213 + $0x278] sm:$0xff] %v2086
        %2343 = vst [vmem:[%s213 + $0x280] sm:$0xff] %v2087
        %2344 = vst [vmem:[%s213 + $0x288] sm:$0xff] %v2088
        %2345 = vst [vmem:[%s213 + $0x290] sm:$0xff] %v2089
        %2346 = vst [vmem:[%s213 + $0x298] sm:$0xff] %v2090
        %2347 = vst [vmem:[%s213 + $0x2a0] sm:$0xff] %v2091
        %2348 = vst [vmem:[%s213 + $0x2a8] sm:$0xff] %v2092
        %2349 = vst [vmem:[%s213 + $0x2b0] sm:$0xff] %v2093
        %2350 = vst [vmem:[%s213 + $0x2b8] sm:$0xff] %v2094
        %2351 = vst [vmem:[%s213 + $0x2c0] sm:$0xff] %v2095
        %2352 = vst [vmem:[%s213 + $0x2c8] sm:$0xff] %v2096
        %2353 = vst [vmem:[%s213 + $0x2d0] sm:$0xff] %v2097
        %2354 = vst [vmem:[%s213 + $0x2d8] sm:$0xff] %v2098
        %2355 = vst [vmem:[%s213 + $0x2e0] sm:$0xff] %v2099
        %2356 = vst [vmem:[%s213 + $0x2e8] sm:$0xff] %v2100
        %2357 = vst [vmem:[%s213 + $0x2f0] sm:$0xff] %v2101
        %2358 = vst [vmem:[%s213 + $0x2f8] sm:$0xff] %v2102
        %2359 = vst [vmem:[%s213 + $0x300] sm:$0xff] %v2103
        %2360 = vst [vmem:[%s213 + $0x308] sm:$0xff] %v2104
        %2361 = vst [vmem:[%s213 + $0x310] sm:$0xff] %v2105
        %2362 = vst [vmem:[%s213 + $0x318] sm:$0xff] %v2106
        %2363 = vst [vmem:[%s213 + $0x320] sm:$0xff] %v2107
        %2364 = vst [vmem:[%s213 + $0x328] sm:$0xff] %v2108
        %2365 = vst [vmem:[%s213 + $0x330] sm:$0xff] %v2109
        %2366 = vst [vmem:[%s213 + $0x338] sm:$0xff] %v2110
        %2367 = vst [vmem:[%s213 + $0x340] sm:$0xff] %v2111
        %2368 = vst [vmem:[%s213 + $0x348] sm:$0xff] %v2112
        %2369 = vst [vmem:[%s213 + $0x350] sm:$0xff] %v2113
        %2370 = vst [vmem:[%s213 + $0x358] sm:$0xff] %v2114
        %2371 = vst [vmem:[%s213 + $0x360] sm:$0xff] %v2115
        %2372 = vst [vmem:[%s213 + $0x368] sm:$0xff] %v2116
        %2373 = vst [vmem:[%s213 + $0x370] sm:$0xff] %v2117
        %2374 = vst [vmem:[%s213 + $0x378] sm:$0xff] %v2118
        %2375 = vst [vmem:[%s213 + $0x380] sm:$0xff] %v2119
        %2376 = vst [vmem:[%s213 + $0x388] sm:$0xff] %v2120
        %2377 = vst [vmem:[%s213 + $0x390] sm:$0xff] %v2121
        %2378 = vst [vmem:[%s213 + $0x398] sm:$0xff] %v2122
        %2379 = vst [vmem:[%s213 + $0x3a0] sm:$0xff] %v2123
        %2380 = vst [vmem:[%s213 + $0x3a8] sm:$0xff] %v2124
        %2381 = vst [vmem:[%s213 + $0x3b0] sm:$0xff] %v2125
        %2382 = vst [vmem:[%s213 + $0x3b8] sm:$0xff] %v2126
        %2383 = vst [vmem:[%s213 + $0x3c0] sm:$0xff] %v2127
        %2384 = vst [vmem:[%s213 + $0x3c8] sm:$0xff] %v2128
        %2385 = vst [vmem:[%s213 + $0x3d0] sm:$0xff] %v2129
        %2386 = vst [vmem:[%s213 + $0x3d8] sm:$0xff] %v2130
        %2387 = vst [vmem:[%s213 + $0x3e0] sm:$0xff] %v2131
        %2388 = vst [vmem:[%s213 + $0x3e8] sm:$0xff] %v2132
        %2389 = vst [vmem:[%s213 + $0x3f0] sm:$0xff] %v2133
        %2390 = vst [vmem:[%s213 + $0x3f8] sm:$0xff] %v2134
        %s2391 = sand.u32 %s97, 1
        %s2392 = scalar_lea.sflag [#allocation4], %s2391
        %s2393 = sand.u32 %s97, 1
        %s2394 = smul.addr %s2393, 1024
        %s2395 = scalar_lea.vmem [#allocation8], %s2394
        // Predicated region
        $region45: #{tpu_custom_call.1} parent=31 // pred_check
          %p2396 = pneg %p107
        $region46: #{tpu_custom_call.1} parent=31 // pred_check_branch
          %2398 = sbr.rel (%p2396) target = $region48
        $region47: #{tpu_custom_call.1} parent=31 // pred_region
          %s2400 = ssub.s32 16384, 16384
          %2401 = vsyncadd %s2392, %s2400
          %s2402 = smul.addr %s21, 256
          %s2403 = smul.addr %s2402, 64
          %s2404 = scalar_lea.hbm %s3, %s2403
          %s2405 = sshll.u32 %s2395, 4
          %s2406 = int_to_ptr.vmem [resolvable:$true] %s2405
          %2411 = dma.vmem_to_hbm [thread:$0]  %s2406, 16384, %s2404, %s2392, 512, 512, 32
        $region48: #{tpu_custom_call.1} parent=31 // pred_fallthru
          _
      $region32: #{tpu_custom_call.1} parent=5 // pred_fallthru
        _
      %p2412 = scmp.le.s32.totalorder 2, %s16
      // Predicated region
      $region49: #{tpu_custom_call.1} parent=5 // pred_check
        %p2413 = pneg %p2412
      $region50: #{tpu_custom_call.1} parent=5 // pred_check_branch
        %2415 = sbr.rel (%p2413) target = $region52
      $region51: #{tpu_custom_call.1} parent=5 // pred_region
        %s2416 = ssub.s32 %s16, 2
        // Predicated region
        $region53: #{tpu_custom_call.1} parent=51 // pred_check
          %p2417 = pneg %p113
        $region54: #{tpu_custom_call.1} parent=51 // pred_check_branch
          %2419 = sbr.rel (%p2417) target = $region56
        $region55: #{tpu_custom_call.1} parent=51 // pred_region
          %s2420 = sand.u32 %s98, 1
          %s2421 = scalar_lea.sflag [#allocation4], %s2420
          %s2422 = sand.u32 %s98, 1
          %s2423 = smul.addr %s2422, 1024
          %s2424 = scalar_lea.vmem [#allocation8], %s2423
          %2425 = dma.done %s2421, 16384
        $region56: #{tpu_custom_call.1} parent=51 // pred_fallthru
          _
      $region52: #{tpu_custom_call.1} parent=5 // pred_fallthru
        _
    $region6: #{tpu_custom_call.1} parent=1 // loop_footer
      %s20 = sadd.s32 1, %s16
    $region7: #{tpu_custom_call.1} parent=1 // loop_footer_branch
      %15 = sbr.rel target = $region3
    $region8: #{tpu_custom_call.1} parent=1 // loop_exit
      _
    %2426 = vsyncpa [#allocation3], 1
    %s2427 = scalar_lea.sflag [#allocation3], 1
    %2428 = vsyncpa %s2427, 1
    %2429 = vsyncpa [#allocation6], 1
    %2430 = vsyncpa [#allocation4], 1
    %s2431 = scalar_lea.sflag [#allocation4], 1
    %2432 = vsyncpa %s2431, 1

</llo_original>
